<compile_context>
chip_gen: v6e
topology: v6e:2x2x1
jax: 0.10.0
libtpu: 0.0.40
codegen_flags: <defaults>
</compile_context>

<pallas_src>
import functools

import jax
import jax.numpy as jnp
from jax import lax
from jax.experimental import pallas as pl
from jax.experimental.pallas import tpu as pltpu

BN_EPS = 1e-5
HALO = 3  # max Conv1d padding in the network (stem: k=7 -> p=3)


def _round_up(x, m):
    return ((x + m - 1) // m) * m


# ------------------------------ Pallas kernel ------------------------------ #

def _shift_rows(x, d):
    """out[r, :] = x[r + d, :]; rows without a source are zero-filled.

    |d| <= HALO, so this is a small static sublane shift.  With the halo layout
    no per-tap boundary masking is needed: halo rows already hold zeros.
    """
    if d == 0:
        return x
    n, c = x.shape
    z = jnp.zeros((abs(d), c), x.dtype)
    if d > 0:
        return jnp.concatenate([x[d:, :], z], axis=0)
    return jnp.concatenate([z, x[:n + d, :]], axis=0)


def _make_kernel(num_blocks, compute_dtype):
    """Kernel argument order: (x, halo_mask, biases, bias_final, *weights, out)."""

    def conv(h, w_ref, K, P):
        # im2col: one MXU matmul per conv.  h: (N, Cin); w_ref: (K*Cin, Cout).
        hm = h.astype(compute_dtype)
        if K == 1:
            xcol = hm
        else:
            xcol = jnp.concatenate(
                [_shift_rows(hm, k - P) for k in range(K)], axis=1)
        return jnp.dot(xcol, w_ref[...], preferred_element_type=jnp.float32)

    def kernel(x_ref, mask_ref, biases_ref, bfin_ref, *rest):
        weight_refs = list(rest[:-1])
        o_ref = rest[-1]
        wi = iter(weight_refs)
        mask = mask_ref[...]                    # (N, 1) f32, 1.0 on valid rows

        # ----- stem: conv(k=7, p=3) + folded-BN bias + ReLU -----
        h = conv(x_ref[...], next(wi), 7, 3)
        h = jnp.maximum(h + biases_ref[0:1, :], 0.0)

        # ----- residual blocks -----
        b = 1
        for _ in range(num_blocks):
            identity = h
            y = conv(h, next(wi), 1, 0)
            y = jnp.maximum(y + biases_ref[b:b + 1, :], 0.0)
            y = y * mask    # re-zero halo rows so the 3-tap conv sees zero padding
            y = conv(y, next(wi), 3, 1)
            y = jnp.maximum(y + biases_ref[b + 1:b + 2, :], 0.0)
            y = conv(y, next(wi), 1, 0)
            y = y + biases_ref[b + 2:b + 3, :]
            h = jnp.maximum(y + identity, 0.0)
            b += 3

        # ----- final 1x1 conv with real bias -----
        out = conv(h, next(wi), 1, 0) + bfin_ref[...]
        o_ref[...] = out.astype(o_ref.dtype)

    return kernel


# ------------------------- wrapper / parameter prep ------------------------ #

def _fold_conv_bn(w, bn):
    """Fold inference-mode BN into the conv weight.

    w: (Cout, Cin, K) PyTorch layout.  Returns ((K*Cin, Cout) weight, (Cout,) bias).
    """
    scale = bn["gamma"] / jnp.sqrt(bn["var"] + BN_EPS)
    shift = bn["beta"] - bn["mean"] * scale
    wf = w * scale[:, None, None]                               # (Cout, Cin, K)
    w2d = jnp.transpose(wf, (2, 1, 0)).reshape(-1, w.shape[0])  # (K*Cin, Cout)
    return w2d, shift


def _flatten_params(params, compute_dtype):
    weights, inter_biases = [], []
    w2d, b = _fold_conv_bn(params["stem"]["w"], params["stem"]["bn"])
    weights.append(w2d)
    inter_biases.append(b)
    for blk in params["blocks"]:
        for wk, bnk in (("w1", "bn1"), ("w2", "bn2"), ("w3", "bn3")):
            w2d, b = _fold_conv_bn(blk[wk], blk[bnk])
            weights.append(w2d)
            inter_biases.append(b)
    wfin = params["final"]["w"]                                 # (Cout, Cin, 1)
    weights.append(jnp.transpose(wfin, (2, 1, 0)).reshape(-1, wfin.shape[0]))
    weights = [w.astype(compute_dtype) for w in weights]
    biases = jnp.stack(inter_biases, axis=0)        # (1+3*nb, Cinter), f32
    bias_fin = params["final"]["b"].reshape(1, -1)  # (1, Cout), f32
    return weights, biases, bias_fin


@functools.partial(
    jax.jit, static_argnames=("num_blocks", "compute_dtype", "batch_tile"))
def resnet1d_pallas(x_ncl, params, *, num_blocks,
                    compute_dtype=jnp.bfloat16, batch_tile=None):
    """Forward pass.  x_ncl: (B, Cfeat, L) as in PyTorch; returns (B, Cout, L)."""
    B, Cfeat, L = x_ncl.shape
    weights, biases, bias_fin = _flatten_params(params, compute_dtype)
    Cout = bias_fin.shape[1]

    Lp = _round_up(L + 2 * HALO, 8)       # rows per example incl. zero halos
    if batch_tile is None:
        batch_tile = B
    assert B % batch_tile == 0
    nrows = batch_tile * Lp               # rows per grid step (multiple of 8)

    # (B, C, L) -> (B, Lp, C) channels-last with zero halos -> fused (B*Lp, C).
    x_blc = jnp.transpose(x_ncl, (0, 2, 1))
    x_pad = jnp.pad(x_blc, ((0, 0), (HALO, Lp - L - HALO), (0, 0)))
    x2d = x_pad.reshape(B * Lp, Cfeat).astype(compute_dtype)

    # 1.0 on valid rows, 0.0 on halo rows (used to re-zero halos in-kernel).
    pos = jnp.arange(Lp)
    seg = ((pos >= HALO) & (pos < HALO + L)).astype(jnp.float32)
    mask2d = jnp.tile(seg, (B,)).reshape(B * Lp, 1)

    const = lambda i: (0, 0)  # grid-invariant parameter blocks
    grid_spec = pltpu.PrefetchScalarGridSpec(
        num_scalar_prefetch=0,
        grid=(B // batch_tile,),
        in_specs=[pl.BlockSpec((nrows, Cfeat), lambda i: (i, 0)),
                  pl.BlockSpec((nrows, 1), lambda i: (i, 0)),
                  pl.BlockSpec(biases.shape, const),
                  pl.BlockSpec(bias_fin.shape, const)]
                 + [pl.BlockSpec(w.shape, const) for w in weights],
        out_specs=pl.BlockSpec((nrows, Cout), lambda i: (i, 0)),
    )
    out2d = pl.pallas_call(
        _make_kernel(num_blocks, compute_dtype),
        out_shape=jax.ShapeDtypeStruct((B * Lp, Cout), jnp.float32),
        grid_spec=grid_spec,
        compiler_params=pltpu.CompilerParams(
            dimension_semantics=("parallel",)),
    )(x2d, mask2d, biases, bias_fin, *weights)

    out_blc = out2d.reshape(B, Lp, Cout)[:, HALO:HALO + L, :]
    return jnp.transpose(out_blc, (0, 2, 1))  # back to PyTorch NCL


# -------------------- parameter init (PyTorch conventions) ----------------- #

def _init_conv_w(key, cout, cin, k):
    return 0.1 * jax.random.normal(key, (cout, cin, k), jnp.float32)


def _init_bn(key, c):
    k1, k2, k3, k4 = jax.random.split(key, 4)
    return dict(
        gamma=1.0 + 0.1 * jax.random.normal(k1, (c,), jnp.float32),
        beta=0.1 * jax.random.normal(k2, (c,), jnp.float32),
        mean=0.1 * jax.random.normal(k3, (c,), jnp.float32),
        var=0.5 + jax.random.uniform(k4, (c,), jnp.float32),  # positive
    )


def init_params(key, feature_channel, output_channel, intermediate, num_blocks):
    # 2 keys for the stem, 2 for the final conv, 6 per residual block.
    keys = iter(jax.random.split(key, 4 + 6 * num_blocks))
    params = {
        "stem": {"w": _init_conv_w(next(keys), intermediate, feature_channel, 7),
                 "bn": _init_bn(next(keys), intermediate)},
        "blocks": [],
        "final": {"w": _init_conv_w(next(keys), output_channel, intermediate, 1),
                  "b": 0.1 * jax.random.normal(next(keys), (output_channel,),
                                               jnp.float32)},
    }
    for _ in range(num_blocks):
        params["blocks"].append({
            "w1": _init_conv_w(next(keys), intermediate, intermediate, 1),
            "bn1": _init_bn(next(keys), intermediate),
            "w2": _init_conv_w(next(keys), intermediate, intermediate, 3),
            "bn2": _init_bn(next(keys), intermediate),
            "w3": _init_conv_w(next(keys), intermediate, intermediate, 1),
            "bn3": _init_bn(next(keys), intermediate),
        })
    return params


# ------------------------- pure-JAX reference (NCL) ------------------------ #

def _ref_conv(x_ncl, w, pad):
    return lax.conv_general_dilated(
        x_ncl, w, window_strides=(1,), padding=[(pad, pad)],
        dimension_numbers=("NCH", "OIH", "NCH"))


def _ref_bn(y, bn):
    g = bn["gamma"][None, :, None]
    b = bn["beta"][None, :, None]
    m = bn["mean"][None, :, None]
    v = bn["var"][None, :, None]
    return (y - m) / jnp.sqrt(v + BN_EPS) * g + b


def resnet1d_reference(x_ncl, params):
    h = jnp.maximum(_ref_bn(_ref_conv(x_ncl, params["stem"]["w"], 3),
                            params["stem"]["bn"]), 0.0)
    for blk in params["blocks"]:
        idn = h
        y = jnp.maximum(_ref_bn(_ref_conv(h, blk["w1"], 0), blk["bn1"]), 0.0)
        y = jnp.maximum(_ref_bn(_ref_conv(y, blk["w2"], 1), blk["bn2"]), 0.0)
        y = _ref_bn(_ref_conv(y, blk["w3"], 0), blk["bn3"])
        h = jnp.maximum(y + idn, 0.0)
    out = _ref_conv(h, params["final"]["w"], 0) + params["final"]["b"][None, :, None]
    return out


# ----------------------------------- main ---------------------------------- #

if __name__ == "__main__":
    # ResNet(layers=[3], feature_channel=4, output_channel=8,
    #        intermediate_channel=32) -> layer1 has layers[0]-1 = 2 residual blocks.
    B, L = 2, 16
    feature_channel, output_channel, intermediate = 4, 8, 32
    layers = [3]
    num_blocks = layers[0] - 1

    key = jax.random.PRNGKey(0)
    kx, kp = jax.random.split(key)
    x_ncl = jax.random.normal(kx, (B, feature_channel, L), jnp.float32)  # NCL
    params = init_params(kp, feature_channel, output_channel, intermediate,
                         num_blocks)

    ref_ncl = resnet1d_reference(x_ncl, params)

    # Exact path: f32 MXU inputs, tight tolerance (validates the algorithm).
    out_f32 = jax.block_until_ready(
        resnet1d_pallas(x_ncl, params, num_blocks=num_blocks,
                        compute_dtype=jnp.float32))
    assert out_f32.shape == (B, output_channel, L)
    err_f32 = float(jnp.max(jnp.abs(out_f32 - ref_ncl)))
    assert jnp.allclose(out_f32, ref_ncl, atol=1e-4, rtol=1e-4), err_f32

    # Fast path (default): bf16 MXU inputs with f32 accumulation (v6e/v7x).
    out_bf16 = jax.block_until_ready(
        resnet1d_pallas(x_ncl, params, num_blocks=num_blocks,
                        compute_dtype=jnp.bfloat16))
    err_bf16 = float(jnp.max(jnp.abs(out_bf16 - ref_ncl)))
    assert jnp.allclose(out_bf16, ref_ncl, atol=2e-2, rtol=2e-2), err_bf16

    print("KERNEL_OK")
</pallas_src>

<mosaic_0001>
module attributes {stable_mosaic.version = 11 : i64} {
  func.func @kernel(%arg0: i32, %arg1: memref<48x4xf32, #tpu.memory_space<vmem>>, %arg2: memref<48x1xf32, #tpu.memory_space<vmem>>, %arg3: memref<7x32xf32, #tpu.memory_space<vmem>>, %arg4: memref<1x8xf32, #tpu.memory_space<vmem>>, %arg5: memref<28x32xf32, #tpu.memory_space<vmem>>, %arg6: memref<32x32xf32, #tpu.memory_space<vmem>>, %arg7: memref<96x32xf32, #tpu.memory_space<vmem>>, %arg8: memref<32x32xf32, #tpu.memory_space<vmem>>, %arg9: memref<32x32xf32, #tpu.memory_space<vmem>>, %arg10: memref<96x32xf32, #tpu.memory_space<vmem>>, %arg11: memref<32x32xf32, #tpu.memory_space<vmem>>, %arg12: memref<32x8xf32, #tpu.memory_space<vmem>>, %arg13: memref<48x8xf32, #tpu.memory_space<vmem>>) attributes {dimension_semantics = [#tpu.dimension_semantics<parallel>], iteration_bounds = array<i64: 1>, scalar_prefetch = 0 : i64, scratch_operands = 0 : i64, tpu.core_type = #tpu.core_type<tc>, window_params = [{transform_indices = @transform_0, window_bounds = array<i64: 48, 4>}, {transform_indices = @transform_1, window_bounds = array<i64: 48, 1>}, {pipeline_mode = #tpu.pipeline_mode<synchronous>, transform_indices = @transform_2, window_bounds = array<i64: 7, 32>}, {pipeline_mode = #tpu.pipeline_mode<synchronous>, transform_indices = @transform_3, window_bounds = array<i64: 1, 8>}, {pipeline_mode = #tpu.pipeline_mode<synchronous>, transform_indices = @transform_4, window_bounds = array<i64: 28, 32>}, {pipeline_mode = #tpu.pipeline_mode<synchronous>, transform_indices = @transform_5, window_bounds = array<i64: 32, 32>}, {pipeline_mode = #tpu.pipeline_mode<synchronous>, transform_indices = @transform_6, window_bounds = array<i64: 96, 32>}, {pipeline_mode = #tpu.pipeline_mode<synchronous>, transform_indices = @transform_7, window_bounds = array<i64: 32, 32>}, {pipeline_mode = #tpu.pipeline_mode<synchronous>, transform_indices = @transform_8, window_bounds = array<i64: 32, 32>}, {pipeline_mode = #tpu.pipeline_mode<synchronous>, transform_indices = @transform_9, window_bounds = array<i64: 96, 32>}, {pipeline_mode = #tpu.pipeline_mode<synchronous>, transform_indices = @transform_10, window_bounds = array<i64: 32, 32>}, {pipeline_mode = #tpu.pipeline_mode<synchronous>, transform_indices = @transform_11, window_bounds = array<i64: 32, 8>}, {transform_indices = @transform_12, window_bounds = array<i64: 48, 8>}]} {
    %c0 = arith.constant 0 : index
    %c0_0 = arith.constant 0 : index
    %0 = vector.load %arg2[%c0, %c0_0] : memref<48x1xf32, #tpu.memory_space<vmem>>, vector<48x1xf32>
    %c0_1 = arith.constant 0 : index
    %c0_2 = arith.constant 0 : index
    %1 = vector.load %arg1[%c0_1, %c0_2] : memref<48x4xf32, #tpu.memory_space<vmem>>, vector<48x4xf32>
    %cst = arith.constant 0.000000e+00 : f32
    %2 = vector.broadcast %cst : f32 to vector<3x4xf32>
    %3 = vector.extract_strided_slice %1 {offsets = [0, 0], sizes = [45, 4], strides = [1, 1]} : vector<48x4xf32> to vector<45x4xf32>
    %4 = tpu.concatenate %2, %3 in 0 : vector<3x4xf32>, vector<45x4xf32> -> vector<48x4xf32>
    %cst_3 = arith.constant 0.000000e+00 : f32
    %5 = vector.broadcast %cst_3 : f32 to vector<2x4xf32>
    %6 = vector.extract_strided_slice %1 {offsets = [0, 0], sizes = [46, 4], strides = [1, 1]} : vector<48x4xf32> to vector<46x4xf32>
    %7 = tpu.concatenate %5, %6 in 0 : vector<2x4xf32>, vector<46x4xf32> -> vector<48x4xf32>
    %cst_4 = arith.constant 0.000000e+00 : f32
    %8 = vector.broadcast %cst_4 : f32 to vector<1x4xf32>
    %9 = vector.extract_strided_slice %1 {offsets = [0, 0], sizes = [47, 4], strides = [1, 1]} : vector<48x4xf32> to vector<47x4xf32>
    %10 = tpu.concatenate %8, %9 in 0 : vector<1x4xf32>, vector<47x4xf32> -> vector<48x4xf32>
    %cst_5 = arith.constant 0.000000e+00 : f32
    %11 = vector.broadcast %cst_5 : f32 to vector<1x4xf32>
    %12 = vector.extract_strided_slice %1 {offsets = [1, 0], sizes = [47, 4], strides = [1, 1]} : vector<48x4xf32> to vector<47x4xf32>
    %13 = tpu.concatenate %12, %11 in 0 : vector<47x4xf32>, vector<1x4xf32> -> vector<48x4xf32>
    %cst_6 = arith.constant 0.000000e+00 : f32
    %14 = vector.broadcast %cst_6 : f32 to vector<2x4xf32>
    %15 = vector.extract_strided_slice %1 {offsets = [2, 0], sizes = [46, 4], strides = [1, 1]} : vector<48x4xf32> to vector<46x4xf32>
    %16 = tpu.concatenate %15, %14 in 0 : vector<46x4xf32>, vector<2x4xf32> -> vector<48x4xf32>
    %cst_7 = arith.constant 0.000000e+00 : f32
    %17 = vector.broadcast %cst_7 : f32 to vector<3x4xf32>
    %18 = vector.extract_strided_slice %1 {offsets = [3, 0], sizes = [45, 4], strides = [1, 1]} : vector<48x4xf32> to vector<45x4xf32>
    %19 = tpu.concatenate %18, %17 in 0 : vector<45x4xf32>, vector<3x4xf32> -> vector<48x4xf32>
    %20 = tpu.concatenate %4, %7, %10, %1, %13, %16, %19 in 1 : vector<48x4xf32>, vector<48x4xf32>, vector<48x4xf32>, vector<48x4xf32>, vector<48x4xf32>, vector<48x4xf32>, vector<48x4xf32> -> vector<48x28xf32>
    %c0_8 = arith.constant 0 : index
    %c0_9 = arith.constant 0 : index
    %21 = vector.load %arg5[%c0_8, %c0_9] : memref<28x32xf32, #tpu.memory_space<vmem>>, vector<28x32xf32>
    %cst_10 = arith.constant dense<0.000000e+00> : vector<48x32xf32>
    %22 = tpu.matmul %20, %21, %cst_10 {dimension_numbers = #tpu.dot_dimension_numbers<[1], [0], [0], [1], [0, 0, 1, 1], [], []>} : vector<48x28xf32>, vector<28x32xf32>, vector<48x32xf32> -> vector<48x32xf32>
    %c0_11 = arith.constant 0 : index
    %c0_12 = arith.constant 0 : index
    %23 = vector.load %arg3[%c0_11, %c0_12] : memref<7x32xf32, #tpu.memory_space<vmem>>, vector<1x32xf32>
    %24 = vector.broadcast %23 : vector<1x32xf32> to vector<48x32xf32>
    %25 = arith.addf %22, %24 : vector<48x32xf32>
    %cst_13 = arith.constant 0.000000e+00 : f32
    %26 = vector.broadcast %cst_13 : f32 to vector<48x32xf32>
    %27 = arith.maximumf %25, %26 : vector<48x32xf32>
    %c0_14 = arith.constant 0 : index
    %c0_15 = arith.constant 0 : index
    %28 = vector.load %arg6[%c0_14, %c0_15] : memref<32x32xf32, #tpu.memory_space<vmem>>, vector<32x32xf32>
    %cst_16 = arith.constant dense<0.000000e+00> : vector<48x32xf32>
    %29 = tpu.matmul %27, %28, %cst_16 {dimension_numbers = #tpu.dot_dimension_numbers<[1], [0], [0], [1], [0, 0, 1, 1], [], []>} : vector<48x32xf32>, vector<32x32xf32>, vector<48x32xf32> -> vector<48x32xf32>
    %c1 = arith.constant 1 : index
    %c0_17 = arith.constant 0 : index
    %30 = vector.load %arg3[%c1, %c0_17] : memref<7x32xf32, #tpu.memory_space<vmem>>, vector<1x32xf32>
    %31 = vector.broadcast %30 : vector<1x32xf32> to vector<48x32xf32>
    %32 = arith.addf %29, %31 : vector<48x32xf32>
    %cst_18 = arith.constant 0.000000e+00 : f32
    %33 = vector.broadcast %cst_18 : f32 to vector<48x32xf32>
    %34 = arith.maximumf %32, %33 : vector<48x32xf32>
    %35 = vector.broadcast %0 : vector<48x1xf32> to vector<48x32xf32>
    %36 = arith.mulf %34, %35 : vector<48x32xf32>
    %cst_19 = arith.constant 0.000000e+00 : f32
    %37 = vector.broadcast %cst_19 : f32 to vector<1x32xf32>
    %38 = vector.extract_strided_slice %36 {offsets = [0, 0], sizes = [47, 32], strides = [1, 1]} : vector<48x32xf32> to vector<47x32xf32>
    %39 = tpu.concatenate %37, %38 in 0 : vector<1x32xf32>, vector<47x32xf32> -> vector<48x32xf32>
    %cst_20 = arith.constant 0.000000e+00 : f32
    %40 = vector.broadcast %cst_20 : f32 to vector<1x32xf32>
    %41 = vector.extract_strided_slice %36 {offsets = [1, 0], sizes = [47, 32], strides = [1, 1]} : vector<48x32xf32> to vector<47x32xf32>
    %42 = tpu.concatenate %41, %40 in 0 : vector<47x32xf32>, vector<1x32xf32> -> vector<48x32xf32>
    %43 = tpu.concatenate %39, %36, %42 in 1 : vector<48x32xf32>, vector<48x32xf32>, vector<48x32xf32> -> vector<48x96xf32>
    %c0_21 = arith.constant 0 : index
    %c0_22 = arith.constant 0 : index
    %44 = vector.load %arg7[%c0_21, %c0_22] : memref<96x32xf32, #tpu.memory_space<vmem>>, vector<96x32xf32>
    %cst_23 = arith.constant dense<0.000000e+00> : vector<48x32xf32>
    %45 = tpu.matmul %43, %44, %cst_23 {dimension_numbers = #tpu.dot_dimension_numbers<[1], [0], [0], [1], [0, 0, 1, 1], [], []>} : vector<48x96xf32>, vector<96x32xf32>, vector<48x32xf32> -> vector<48x32xf32>
    %c2 = arith.constant 2 : index
    %c0_24 = arith.constant 0 : index
    %46 = vector.load %arg3[%c2, %c0_24] : memref<7x32xf32, #tpu.memory_space<vmem>>, vector<1x32xf32>
    %47 = vector.broadcast %46 : vector<1x32xf32> to vector<48x32xf32>
    %48 = arith.addf %45, %47 : vector<48x32xf32>
    %cst_25 = arith.constant 0.000000e+00 : f32
    %49 = vector.broadcast %cst_25 : f32 to vector<48x32xf32>
    %50 = arith.maximumf %48, %49 : vector<48x32xf32>
    %c0_26 = arith.constant 0 : index
    %c0_27 = arith.constant 0 : index
    %51 = vector.load %arg8[%c0_26, %c0_27] : memref<32x32xf32, #tpu.memory_space<vmem>>, vector<32x32xf32>
    %cst_28 = arith.constant dense<0.000000e+00> : vector<48x32xf32>
    %52 = tpu.matmul %50, %51, %cst_28 {dimension_numbers = #tpu.dot_dimension_numbers<[1], [0], [0], [1], [0, 0, 1, 1], [], []>} : vector<48x32xf32>, vector<32x32xf32>, vector<48x32xf32> -> vector<48x32xf32>
    %c3 = arith.constant 3 : index
    %c0_29 = arith.constant 0 : index
    %53 = vector.load %arg3[%c3, %c0_29] : memref<7x32xf32, #tpu.memory_space<vmem>>, vector<1x32xf32>
    %54 = vector.broadcast %53 : vector<1x32xf32> to vector<48x32xf32>
    %55 = arith.addf %52, %54 : vector<48x32xf32>
    %56 = arith.addf %55, %27 : vector<48x32xf32>
    %cst_30 = arith.constant 0.000000e+00 : f32
    %57 = vector.broadcast %cst_30 : f32 to vector<48x32xf32>
    %58 = arith.maximumf %56, %57 : vector<48x32xf32>
    %c0_31 = arith.constant 0 : index
    %c0_32 = arith.constant 0 : index
    %59 = vector.load %arg9[%c0_31, %c0_32] : memref<32x32xf32, #tpu.memory_space<vmem>>, vector<32x32xf32>
    %cst_33 = arith.constant dense<0.000000e+00> : vector<48x32xf32>
    %60 = tpu.matmul %58, %59, %cst_33 {dimension_numbers = #tpu.dot_dimension_numbers<[1], [0], [0], [1], [0, 0, 1, 1], [], []>} : vector<48x32xf32>, vector<32x32xf32>, vector<48x32xf32> -> vector<48x32xf32>
    %c4 = arith.constant 4 : index
    %c0_34 = arith.constant 0 : index
    %61 = vector.load %arg3[%c4, %c0_34] : memref<7x32xf32, #tpu.memory_space<vmem>>, vector<1x32xf32>
    %62 = vector.broadcast %61 : vector<1x32xf32> to vector<48x32xf32>
    %63 = arith.addf %60, %62 : vector<48x32xf32>
    %cst_35 = arith.constant 0.000000e+00 : f32
    %64 = vector.broadcast %cst_35 : f32 to vector<48x32xf32>
    %65 = arith.maximumf %63, %64 : vector<48x32xf32>
    %66 = vector.broadcast %0 : vector<48x1xf32> to vector<48x32xf32>
    %67 = arith.mulf %65, %66 : vector<48x32xf32>
    %cst_36 = arith.constant 0.000000e+00 : f32
    %68 = vector.broadcast %cst_36 : f32 to vector<1x32xf32>
    %69 = vector.extract_strided_slice %67 {offsets = [0, 0], sizes = [47, 32], strides = [1, 1]} : vector<48x32xf32> to vector<47x32xf32>
    %70 = tpu.concatenate %68, %69 in 0 : vector<1x32xf32>, vector<47x32xf32> -> vector<48x32xf32>
    %cst_37 = arith.constant 0.000000e+00 : f32
    %71 = vector.broadcast %cst_37 : f32 to vector<1x32xf32>
    %72 = vector.extract_strided_slice %67 {offsets = [1, 0], sizes = [47, 32], strides = [1, 1]} : vector<48x32xf32> to vector<47x32xf32>
    %73 = tpu.concatenate %72, %71 in 0 : vector<47x32xf32>, vector<1x32xf32> -> vector<48x32xf32>
    %74 = tpu.concatenate %70, %67, %73 in 1 : vector<48x32xf32>, vector<48x32xf32>, vector<48x32xf32> -> vector<48x96xf32>
    %c0_38 = arith.constant 0 : index
    %c0_39 = arith.constant 0 : index
    %75 = vector.load %arg10[%c0_38, %c0_39] : memref<96x32xf32, #tpu.memory_space<vmem>>, vector<96x32xf32>
    %cst_40 = arith.constant dense<0.000000e+00> : vector<48x32xf32>
    %76 = tpu.matmul %74, %75, %cst_40 {dimension_numbers = #tpu.dot_dimension_numbers<[1], [0], [0], [1], [0, 0, 1, 1], [], []>} : vector<48x96xf32>, vector<96x32xf32>, vector<48x32xf32> -> vector<48x32xf32>
    %c5 = arith.constant 5 : index
    %c0_41 = arith.constant 0 : index
    %77 = vector.load %arg3[%c5, %c0_41] : memref<7x32xf32, #tpu.memory_space<vmem>>, vector<1x32xf32>
    %78 = vector.broadcast %77 : vector<1x32xf32> to vector<48x32xf32>
    %79 = arith.addf %76, %78 : vector<48x32xf32>
    %cst_42 = arith.constant 0.000000e+00 : f32
    %80 = vector.broadcast %cst_42 : f32 to vector<48x32xf32>
    %81 = arith.maximumf %79, %80 : vector<48x32xf32>
    %c0_43 = arith.constant 0 : index
    %c0_44 = arith.constant 0 : index
    %82 = vector.load %arg11[%c0_43, %c0_44] : memref<32x32xf32, #tpu.memory_space<vmem>>, vector<32x32xf32>
    %cst_45 = arith.constant dense<0.000000e+00> : vector<48x32xf32>
    %83 = tpu.matmul %81, %82, %cst_45 {dimension_numbers = #tpu.dot_dimension_numbers<[1], [0], [0], [1], [0, 0, 1, 1], [], []>} : vector<48x32xf32>, vector<32x32xf32>, vector<48x32xf32> -> vector<48x32xf32>
    %c6 = arith.constant 6 : index
    %c0_46 = arith.constant 0 : index
    %84 = vector.load %arg3[%c6, %c0_46] : memref<7x32xf32, #tpu.memory_space<vmem>>, vector<1x32xf32>
    %85 = vector.broadcast %84 : vector<1x32xf32> to vector<48x32xf32>
    %86 = arith.addf %83, %85 : vector<48x32xf32>
    %87 = arith.addf %86, %58 : vector<48x32xf32>
    %cst_47 = arith.constant 0.000000e+00 : f32
    %88 = vector.broadcast %cst_47 : f32 to vector<48x32xf32>
    %89 = arith.maximumf %87, %88 : vector<48x32xf32>
    %c0_48 = arith.constant 0 : index
    %c0_49 = arith.constant 0 : index
    %90 = vector.load %arg12[%c0_48, %c0_49] : memref<32x8xf32, #tpu.memory_space<vmem>>, vector<32x8xf32>
    %cst_50 = arith.constant dense<0.000000e+00> : vector<48x8xf32>
    %91 = tpu.matmul %89, %90, %cst_50 {dimension_numbers = #tpu.dot_dimension_numbers<[1], [0], [0], [1], [0, 0, 1, 1], [], []>} : vector<48x32xf32>, vector<32x8xf32>, vector<48x8xf32> -> vector<48x8xf32>
    %c0_51 = arith.constant 0 : index
    %c0_52 = arith.constant 0 : index
    %92 = vector.load %arg4[%c0_51, %c0_52] : memref<1x8xf32, #tpu.memory_space<vmem>>, vector<1x8xf32>
    %93 = vector.broadcast %92 : vector<1x8xf32> to vector<48x8xf32>
    %94 = arith.addf %91, %93 : vector<48x8xf32>
    %c0_53 = arith.constant 0 : index
    %c0_54 = arith.constant 0 : index
    %95 = vector.load %arg13[%c0_53, %c0_54] : memref<48x8xf32, #tpu.memory_space<vmem>>, vector<48x8xf32>
    tpu.vector_store %arg13[%c0_53, %c0_54], %94 {strides = array<i32>} : memref<48x8xf32, #tpu.memory_space<vmem>>, vector<48x8xf32>,
    return
  }
  func.func @transform_0(%arg0: i32) -> (i32, i32) {
    %c0_i32 = arith.constant 0 : i32
    %c0_i32_0 = arith.constant 0 : i32
    return %arg0, %c0_i32 : i32, i32
  }
  func.func @transform_1(%arg0: i32) -> (i32, i32) {
    %c0_i32 = arith.constant 0 : i32
    %c0_i32_0 = arith.constant 0 : i32
    return %arg0, %c0_i32 : i32, i32
  }
  func.func @transform_2(%arg0: i32) -> (i32, i32) {
    %c0_i32 = arith.constant 0 : i32
    %c0_i32_0 = arith.constant 0 : i32
    %c0_i32_1 = arith.constant 0 : i32
    return %c0_i32, %c0_i32_0 : i32, i32
  }
  func.func @transform_3(%arg0: i32) -> (i32, i32) {
    %c0_i32 = arith.constant 0 : i32
    %c0_i32_0 = arith.constant 0 : i32
    %c0_i32_1 = arith.constant 0 : i32
    return %c0_i32, %c0_i32_0 : i32, i32
  }
  func.func @transform_4(%arg0: i32) -> (i32, i32) {
    %c0_i32 = arith.constant 0 : i32
    %c0_i32_0 = arith.constant 0 : i32
    %c0_i32_1 = arith.constant 0 : i32
    return %c0_i32, %c0_i32_0 : i32, i32
  }
  func.func @transform_5(%arg0: i32) -> (i32, i32) {
    %c0_i32 = arith.constant 0 : i32
    %c0_i32_0 = arith.constant 0 : i32
    %c0_i32_1 = arith.constant 0 : i32
    return %c0_i32, %c0_i32_0 : i32, i32
  }
  func.func @transform_6(%arg0: i32) -> (i32, i32) {
    %c0_i32 = arith.constant 0 : i32
    %c0_i32_0 = arith.constant 0 : i32
    %c0_i32_1 = arith.constant 0 : i32
    return %c0_i32, %c0_i32_0 : i32, i32
  }
  func.func @transform_7(%arg0: i32) -> (i32, i32) {
    %c0_i32 = arith.constant 0 : i32
    %c0_i32_0 = arith.constant 0 : i32
    %c0_i32_1 = arith.constant 0 : i32
    return %c0_i32, %c0_i32_0 : i32, i32
  }
  func.func @transform_8(%arg0: i32) -> (i32, i32) {
    %c0_i32 = arith.constant 0 : i32
    %c0_i32_0 = arith.constant 0 : i32
    %c0_i32_1 = arith.constant 0 : i32
    return %c0_i32, %c0_i32_0 : i32, i32
  }
  func.func @transform_9(%arg0: i32) -> (i32, i32) {
    %c0_i32 = arith.constant 0 : i32
    %c0_i32_0 = arith.constant 0 : i32
    %c0_i32_1 = arith.constant 0 : i32
    return %c0_i32, %c0_i32_0 : i32, i32
  }
  func.func @transform_10(%arg0: i32) -> (i32, i32) {
    %c0_i32 = arith.constant 0 : i32
    %c0_i32_0 = arith.constant 0 : i32
    %c0_i32_1 = arith.constant 0 : i32
    return %c0_i32, %c0_i32_0 : i32, i32
  }
  func.func @transform_11(%arg0: i32) -> (i32, i32) {
    %c0_i32 = arith.constant 0 : i32
    %c0_i32_0 = arith.constant 0 : i32
    %c0_i32_1 = arith.constant 0 : i32
    return %c0_i32, %c0_i32_0 : i32, i32
  }
  func.func @transform_12(%arg0: i32) -> (i32, i32) {
    %c0_i32 = arith.constant 0 : i32
    %c0_i32_0 = arith.constant 0 : i32
    return %arg0, %c0_i32 : i32, i32
  }
}

</mosaic_0001>

<llo_original>
// kernel: tile.8
$region0: #{tile.8}
  #allocation0 [shape = 's32[1]{0}', space=sflag, size = 0x4, scoped, tag = 'scoped memory for tile.8']
  %s0 = inlined_call_operand.vmem [shape: f32[24], index: 0, kind: input, shape index: {}]
  %s1 = inlined_call_operand.vmem [shape: f32[2,24], index: 1, kind: output, shape index: {}]
  // Predicated region
  $region2: #{tile.8} parent=0 // pred_check
    _
  $region3: #{tile.8} parent=0 // pred_check_branch
    %3 = sbr.rel (0) target = $region5
  $region4: #{tile.8} parent=0 // pred_region
    _
  $region5: #{tile.8} parent=0 // pred_fallthru
    _
  %v4 = vld [vmem:[%s0] ss:$0 sm:$0xff]
  %5 = vst [vmem:[%s1] sm:$0x3] %v4

// kernel: tile.0
$region0: #{tile.0}
  %s0 = inlined_call_operand.vmem [shape: f32[2,24], index: 0, kind: input, shape index: {}]
  %s1 = inlined_call_operand.vmem [shape: f32[48,1], index: 1, kind: output, shape index: {}]
  $region1: #{tile.0} parent=0
    #allocation0 [shape = 'u8[4096]{0}', space=vmem, size = 0x1000, scoped, tag = 'scoped mem for input reshape']
    %s3 = sshll.u32 1, 2
    %s4 = ssub.s32 %s3, 1
    %v5 = vld [vmem:[%s0] sm:%s4]
    %6 = vst [vmem:[#allocation0] sm:%s4] %v5
    %v7 = vld [vmem:[#allocation0] sm:$0x3]
    %vm8 = vcmask 7168
    %9 = vst.msk [vmem:[%s1] ss:$24 sm:$0x3] %vm8, %v7
    %v10 = vld [vmem:[#allocation0] sm:$0x3]
    %11 = vrot.lane.b32.xlu0 %v10, 127
    %v12 = vpop.permute.xlu0 %11
    %vm13 = vcmask 7168
    %s14 = scalar_lea.vmem %s1, 1
    %15 = vst.msk [vmem:[%s14] ss:$24 sm:$0x3] %vm13, %v12
    %v16 = vld [vmem:[#allocation0] sm:$0x3]
    %17 = vrot.lane.b32.xlu0 %v16, 126
    %v18 = vpop.permute.xlu0 %17
    %vm19 = vcmask 7168
    %s20 = scalar_lea.vmem %s1, 2
    %21 = vst.msk [vmem:[%s20] ss:$24 sm:$0x3] %vm19, %v18
    %v22 = vld [vmem:[#allocation0] sm:$0x3]
    %23 = vrot.lane.b32.xlu0 %v22, 125
    %v24 = vpop.permute.xlu0 %23
    %vm25 = vcmask 7168
    %s26 = scalar_lea.vmem %s1, 3
    %27 = vst.msk [vmem:[%s26] ss:$24 sm:$0x3] %vm25, %v24
    %v28 = vld [vmem:[#allocation0] sm:$0x3]
    %29 = vrot.lane.b32.xlu0 %v28, 124
    %v30 = vpop.permute.xlu0 %29
    %vm31 = vcmask 7168
    %s32 = scalar_lea.vmem %s1, 4
    %33 = vst.msk [vmem:[%s32] ss:$24 sm:$0x3] %vm31, %v30
    %v34 = vld [vmem:[#allocation0] sm:$0x3]
    %35 = vrot.lane.b32.xlu0 %v34, 123
    %v36 = vpop.permute.xlu0 %35
    %vm37 = vcmask 7168
    %s38 = scalar_lea.vmem %s1, 5
    %39 = vst.msk [vmem:[%s38] ss:$24 sm:$0x3] %vm37, %v36
    %v40 = vld [vmem:[#allocation0] sm:$0x3]
    %41 = vrot.lane.b32.xlu0 %v40, 122
    %v42 = vpop.permute.xlu0 %41
    %vm43 = vcmask 7168
    %s44 = scalar_lea.vmem %s1, 6
    %45 = vst.msk [vmem:[%s44] ss:$24 sm:$0x3] %vm43, %v42
    %v46 = vld [vmem:[#allocation0] sm:$0x3]
    %47 = vrot.lane.b32.xlu0 %v46, 121
    %v48 = vpop.permute.xlu0 %47
    %vm49 = vcmask 7168
    %s50 = scalar_lea.vmem %s1, 7
    %51 = vst.msk [vmem:[%s50] ss:$24 sm:$0x3] %vm49, %v48
    %s52 = scalar_lea.vmem [#allocation0], 1
    %s53 = smov 3
    %v54 = vld [vmem:[%s52] ss:$-1 sm:%s53]
    %55 = vrot.lane.b32.xlu0 %v54, 120
    %v56 = vpop.permute.xlu0 %55
    %vm57 = vcmask 7168
    %s58 = scalar_lea.vmem %s1, 32
    %59 = vst.msk [vmem:[%s58] ss:$-24 sm:$0x3] %vm57, %v56
    %s60 = scalar_lea.vmem [#allocation0], 1
    %s61 = smov 3
    %v62 = vld [vmem:[%s60] ss:$-1 sm:%s61]
    %63 = vrot.lane.b32.xlu0 %v62, 119
    %v64 = vpop.permute.xlu0 %63
    %vm65 = vcmask 7168
    %s66 = scalar_lea.vmem %s1, 33
    %67 = vst.msk [vmem:[%s66] ss:$-24 sm:$0x3] %vm65, %v64
    %s68 = scalar_lea.vmem [#allocation0], 1
    %s69 = smov 3
    %v70 = vld [vmem:[%s68] ss:$-1 sm:%s69]
    %71 = vrot.lane.b32.xlu0 %v70, 118
    %v72 = vpop.permute.xlu0 %71
    %vm73 = vcmask 7168
    %s74 = scalar_lea.vmem %s1, 34
    %75 = vst.msk [vmem:[%s74] ss:$-24 sm:$0x3] %vm73, %v72
    %s76 = scalar_lea.vmem [#allocation0], 1
    %s77 = smov 3
    %v78 = vld [vmem:[%s76] ss:$-1 sm:%s77]
    %79 = vrot.lane.b32.xlu0 %v78, 117
    %v80 = vpop.permute.xlu0 %79
    %vm81 = vcmask 7168
    %s82 = scalar_lea.vmem %s1, 35
    %83 = vst.msk [vmem:[%s82] ss:$-24 sm:$0x3] %vm81, %v80
    %s84 = scalar_lea.vmem [#allocation0], 1
    %s85 = smov 3
    %v86 = vld [vmem:[%s84] ss:$-1 sm:%s85]
    %87 = vrot.lane.b32.xlu0 %v86, 116
    %v88 = vpop.permute.xlu0 %87
    %vm89 = vcmask 7168
    %s90 = scalar_lea.vmem %s1, 36
    %91 = vst.msk [vmem:[%s90] ss:$-24 sm:$0x3] %vm89, %v88
    %s92 = scalar_lea.vmem [#allocation0], 1
    %s93 = smov 3
    %v94 = vld [vmem:[%s92] ss:$-1 sm:%s93]
    %95 = vrot.lane.b32.xlu0 %v94, 115
    %v96 = vpop.permute.xlu0 %95
    %vm97 = vcmask 7168
    %s98 = scalar_lea.vmem %s1, 37
    %99 = vst.msk [vmem:[%s98] ss:$-24 sm:$0x3] %vm97, %v96
    %s100 = scalar_lea.vmem [#allocation0], 1
    %s101 = smov 3
    %v102 = vld [vmem:[%s100] ss:$-1 sm:%s101]
    %103 = vrot.lane.b32.xlu0 %v102, 114
    %v104 = vpop.permute.xlu0 %103
    %vm105 = vcmask 7168
    %s106 = scalar_lea.vmem %s1, 38
    %107 = vst.msk [vmem:[%s106] ss:$-24 sm:$0x3] %vm105, %v104
    %s108 = scalar_lea.vmem [#allocation0], 1
    %s109 = smov 3
    %v110 = vld [vmem:[%s108] ss:$-1 sm:%s109]
    %111 = vrot.lane.b32.xlu0 %v110, 113
    %v112 = vpop.permute.xlu0 %111
    %vm113 = vcmask 7168
    %s114 = scalar_lea.vmem %s1, 39
    %115 = vst.msk [vmem:[%s114] ss:$-24 sm:$0x3] %vm113, %v112
    %s116 = scalar_lea.vmem [#allocation0], 1
    %s117 = smov 3
    %v118 = vld [vmem:[%s116] ss:$-1 sm:%s117]
    %119 = vrot.lane.b32.xlu0 %v118, 112
    %v120 = vpop.permute.xlu0 %119
    %vm121 = vcmask 7168
    %s122 = scalar_lea.vmem %s1, 40
    %123 = vst.msk [vmem:[%s122] ss:$-24 sm:$0x3] %vm121, %v120
    %s124 = scalar_lea.vmem [#allocation0], 1
    %s125 = smov 3
    %v126 = vld [vmem:[%s124] ss:$-1 sm:%s125]
    %127 = vrot.lane.b32.xlu0 %v126, 111
    %v128 = vpop.permute.xlu0 %127
    %vm129 = vcmask 7168
    %s130 = scalar_lea.vmem %s1, 41
    %131 = vst.msk [vmem:[%s130] ss:$-24 sm:$0x3] %vm129, %v128
    %s132 = scalar_lea.vmem [#allocation0], 1
    %s133 = smov 3
    %v134 = vld [vmem:[%s132] ss:$-1 sm:%s133]
    %135 = vrot.lane.b32.xlu0 %v134, 110
    %v136 = vpop.permute.xlu0 %135
    %vm137 = vcmask 7168
    %s138 = scalar_lea.vmem %s1, 42
    %139 = vst.msk [vmem:[%s138] ss:$-24 sm:$0x3] %vm137, %v136
    %s140 = scalar_lea.vmem [#allocation0], 1
    %s141 = smov 3
    %v142 = vld [vmem:[%s140] ss:$-1 sm:%s141]
    %143 = vrot.lane.b32.xlu0 %v142, 109
    %v144 = vpop.permute.xlu0 %143
    %vm145 = vcmask 7168
    %s146 = scalar_lea.vmem %s1, 43
    %147 = vst.msk [vmem:[%s146] ss:$-24 sm:$0x3] %vm145, %v144
    %s148 = scalar_lea.vmem [#allocation0], 1
    %s149 = smov 3
    %v150 = vld [vmem:[%s148] ss:$-1 sm:%s149]
    %151 = vrot.lane.b32.xlu0 %v150, 108
    %v152 = vpop.permute.xlu0 %151
    %vm153 = vcmask 7168
    %s154 = scalar_lea.vmem %s1, 44
    %155 = vst.msk [vmem:[%s154] ss:$-24 sm:$0x3] %vm153, %v152
    %s156 = scalar_lea.vmem [#allocation0], 1
    %s157 = smov 3
    %v158 = vld [vmem:[%s156] ss:$-1 sm:%s157]
    %159 = vrot.lane.b32.xlu0 %v158, 107
    %v160 = vpop.permute.xlu0 %159
    %vm161 = vcmask 7168
    %s162 = scalar_lea.vmem %s1, 45
    %163 = vst.msk [vmem:[%s162] ss:$-24 sm:$0x3] %vm161, %v160
    %s164 = scalar_lea.vmem [#allocation0], 1
    %s165 = smov 3
    %v166 = vld [vmem:[%s164] ss:$-1 sm:%s165]
    %167 = vrot.lane.b32.xlu0 %v166, 106
    %v168 = vpop.permute.xlu0 %167
    %vm169 = vcmask 7168
    %s170 = scalar_lea.vmem %s1, 46
    %171 = vst.msk [vmem:[%s170] ss:$-24 sm:$0x3] %vm169, %v168
    %s172 = scalar_lea.vmem [#allocation0], 1
    %s173 = smov 3
    %v174 = vld [vmem:[%s172] ss:$-1 sm:%s173]
    %175 = vrot.lane.b32.xlu0 %v174, 105
    %v176 = vpop.permute.xlu0 %175
    %vm177 = vcmask 7168
    %s178 = scalar_lea.vmem %s1, 47
    %179 = vst.msk [vmem:[%s178] ss:$-24 sm:$0x3] %vm177, %v176

// kernel: resnet1d_pallas.1
$region0: #{resnet1d_pallas.1}
  #allocation0 [shape = 'u32[]', space=smem, size = 0x4, offset = 0x4, fixed_abs, tag = 'smem constant byte address 0x4 - core index']
  #allocation1 [shape = 'u32[144,128]{1,0:T(1,128)}', space=vmem, size = 0x12000, scoped, tag = 'internal scratch']
  %s0 = inlined_call_operand.vmem [shape: f32[48,4], index: 0, kind: input, shape index: {}]
  %s1 = inlined_call_operand.vmem [shape: f32[48,1], index: 1, kind: input, shape index: {}]
  %s2 = inlined_call_operand.vmem [shape: f32[7,32], index: 2, kind: input, shape index: {}]
  %s3 = inlined_call_operand.vmem [shape: f32[1,8], index: 3, kind: input, shape index: {}]
  %s4 = inlined_call_operand.vmem [shape: f32[28,32], index: 4, kind: input, shape index: {}]
  %s5 = inlined_call_operand.vmem [shape: f32[32,32], index: 5, kind: input, shape index: {}]
  %s6 = inlined_call_operand.vmem [shape: f32[96,32], index: 6, kind: input, shape index: {}]
  %s7 = inlined_call_operand.vmem [shape: f32[32,32], index: 7, kind: input, shape index: {}]
  %s8 = inlined_call_operand.vmem [shape: f32[32,32], index: 8, kind: input, shape index: {}]
  %s9 = inlined_call_operand.vmem [shape: f32[96,32], index: 9, kind: input, shape index: {}]
  %s10 = inlined_call_operand.vmem [shape: f32[32,32], index: 10, kind: input, shape index: {}]
  %s11 = inlined_call_operand.vmem [shape: f32[32,8], index: 11, kind: input, shape index: {}]
  %s12 = inlined_call_operand.vmem [shape: f32[48,8], index: 12, kind: output, shape index: {}]
  %s13 = sld [smem:[#allocation0]]
  $region58: #{resnet1d_pallas.1} parent=0
    _
  %s15 = ssub.s32 1, %s13
  %s16 = scalar_select 0, %s15, %s13
  // Predicated region
  $region2: #{resnet1d_pallas.1} parent=0 // pred_check
    _
  $region3: #{resnet1d_pallas.1} parent=0 // pred_check_branch
    %18 = sbr.rel (0) target = $region5
  $region4: #{resnet1d_pallas.1} parent=0 // pred_region
    _
  $region5: #{resnet1d_pallas.1} parent=0 // pred_fallthru
    _
  // Predicated region
  $region6: #{resnet1d_pallas.1} parent=0 // pred_check
    _
  $region7: #{resnet1d_pallas.1} parent=0 // pred_check_branch
    %20 = sbr.rel (0) target = $region9
  $region8: #{resnet1d_pallas.1} parent=0 // pred_region
    _
  $region9: #{resnet1d_pallas.1} parent=0 // pred_fallthru
    _
  // Predicated region
  $region10: #{resnet1d_pallas.1} parent=0 // pred_check
    _
  $region11: #{resnet1d_pallas.1} parent=0 // pred_check_branch
    %22 = sbr.rel (0) target = $region13
  $region12: #{resnet1d_pallas.1} parent=0 // pred_region
    _
  $region13: #{resnet1d_pallas.1} parent=0 // pred_fallthru
    _
  // Predicated region
  $region14: #{resnet1d_pallas.1} parent=0 // pred_check
    _
  $region15: #{resnet1d_pallas.1} parent=0 // pred_check_branch
    %24 = sbr.rel (0) target = $region17
  $region16: #{resnet1d_pallas.1} parent=0 // pred_region
    _
  $region17: #{resnet1d_pallas.1} parent=0 // pred_fallthru
    _
  // Predicated region
  $region18: #{resnet1d_pallas.1} parent=0 // pred_check
    _
  $region19: #{resnet1d_pallas.1} parent=0 // pred_check_branch
    %26 = sbr.rel (0) target = $region21
  $region20: #{resnet1d_pallas.1} parent=0 // pred_region
    _
  $region21: #{resnet1d_pallas.1} parent=0 // pred_fallthru
    _
  // Predicated region
  $region22: #{resnet1d_pallas.1} parent=0 // pred_check
    _
  $region23: #{resnet1d_pallas.1} parent=0 // pred_check_branch
    %28 = sbr.rel (0) target = $region25
  $region24: #{resnet1d_pallas.1} parent=0 // pred_region
    _
  $region25: #{resnet1d_pallas.1} parent=0 // pred_fallthru
    _
  // Predicated region
  $region26: #{resnet1d_pallas.1} parent=0 // pred_check
    _
  $region27: #{resnet1d_pallas.1} parent=0 // pred_check_branch
    %30 = sbr.rel (0) target = $region29
  $region28: #{resnet1d_pallas.1} parent=0 // pred_region
    _
  $region29: #{resnet1d_pallas.1} parent=0 // pred_fallthru
    _
  // Predicated region
  $region30: #{resnet1d_pallas.1} parent=0 // pred_check
    _
  $region31: #{resnet1d_pallas.1} parent=0 // pred_check_branch
    %32 = sbr.rel (0) target = $region33
  $region32: #{resnet1d_pallas.1} parent=0 // pred_region
    _
  $region33: #{resnet1d_pallas.1} parent=0 // pred_fallthru
    _
  // Predicated region
  $region34: #{resnet1d_pallas.1} parent=0 // pred_check
    _
  $region35: #{resnet1d_pallas.1} parent=0 // pred_check_branch
    %34 = sbr.rel (0) target = $region37
  $region36: #{resnet1d_pallas.1} parent=0 // pred_region
    _
  $region37: #{resnet1d_pallas.1} parent=0 // pred_fallthru
    _
  // Predicated region
  $region38: #{resnet1d_pallas.1} parent=0 // pred_check
    _
  $region39: #{resnet1d_pallas.1} parent=0 // pred_check_branch
    %36 = sbr.rel (0) target = $region41
  $region40: #{resnet1d_pallas.1} parent=0 // pred_region
    _
  $region41: #{resnet1d_pallas.1} parent=0 // pred_fallthru
    _
  // Predicated region
  $region42: #{resnet1d_pallas.1} parent=0 // pred_check
    _
  $region43: #{resnet1d_pallas.1} parent=0 // pred_check_branch
    %38 = sbr.rel (0) target = $region45
  $region44: #{resnet1d_pallas.1} parent=0 // pred_region
    _
  $region45: #{resnet1d_pallas.1} parent=0 // pred_fallthru
    _
  // Predicated region
  $region46: #{resnet1d_pallas.1} parent=0 // pred_check
    _
  $region47: #{resnet1d_pallas.1} parent=0 // pred_check_branch
    %40 = sbr.rel (0) target = $region49
  $region48: #{resnet1d_pallas.1} parent=0 // pred_region
    _
  $region49: #{resnet1d_pallas.1} parent=0 // pred_fallthru
    _
  %v41 = vld [vmem:[%s1] sm:$0xff]
  %v42 = vld [vmem:[%s1 + $0x8] sm:$0xff]
  %v43 = vld [vmem:[%s1 + $0x10] sm:$0xff]
  %v44 = vld [vmem:[%s1 + $0x18] sm:$0xff]
  %v45 = vld [vmem:[%s1 + $0x20] sm:$0xff]
  %v46 = vld [vmem:[%s1 + $0x28] sm:$0xff]
  %v47 = vld [vmem:[%s0] sm:$0xff]
  %v48 = vld [vmem:[%s0 + $0x8] sm:$0xff]
  %v49 = vld [vmem:[%s0 + $0x10] sm:$0xff]
  %v50 = vld [vmem:[%s0 + $0x18] sm:$0xff]
  %v51 = vld [vmem:[%s0 + $0x20] sm:$0xff]
  %v52 = vld [vmem:[%s0 + $0x28] sm:$0xff]
  %vm59 = vcmask 1042432
  %v60 = vrot.slane %v47, 5
  %v61 = vrot.slane %v48, 5
  %v62 = vsel %vm59, %v60, %v61
  %v63 = vrot.slane %v49, 5
  %v64 = vsel %vm59, %v61, %v63
  %v65 = vrot.slane %v50, 5
  %v66 = vsel %vm59, %v63, %v65
  %v67 = vrot.slane %v51, 5
  %v68 = vsel %vm59, %v65, %v67
  %v69 = vrot.slane %v52, 5
  %v70 = vsel %vm59, %v67, %v69
  %v77 = vsel %vm59, 0.0, %v60
  %vm78 = vcmask 1041408
  %v79 = vrot.slane %v47, 6
  %v80 = vrot.slane %v48, 6
  %v81 = vsel %vm78, %v79, %v80
  %v82 = vrot.slane %v49, 6
  %v83 = vsel %vm78, %v80, %v82
  %v84 = vrot.slane %v50, 6
  %v85 = vsel %vm78, %v82, %v84
  %v86 = vrot.slane %v51, 6
  %v87 = vsel %vm78, %v84, %v86
  %v88 = vrot.slane %v52, 6
  %v89 = vsel %vm78, %v86, %v88
  %v91 = vsel %vm78, 0.0, %v79
  %vm92 = vcmask 1040384
  %v93 = vrot.slane %v47, 7
  %v94 = vrot.slane %v48, 7
  %v95 = vsel %vm92, %v93, %v94
  %v96 = vrot.slane %v49, 7
  %v97 = vsel %vm92, %v94, %v96
  %v98 = vrot.slane %v50, 7
  %v99 = vsel %vm92, %v96, %v98
  %v100 = vrot.slane %v51, 7
  %v101 = vsel %vm92, %v98, %v100
  %v102 = vrot.slane %v52, 7
  %v103 = vsel %vm92, %v100, %v102
  %v105 = vsel %vm92, 0.0, %v93
  %vm106 = vcmask 1046528
  %v107 = vrot.slane %v47, 1
  %v108 = vrot.slane %v48, 1
  %v109 = vsel %vm106, %v107, %v108
  %v110 = vrot.slane %v49, 1
  %v111 = vsel %vm106, %v108, %v110
  %v112 = vrot.slane %v50, 1
  %v113 = vsel %vm106, %v110, %v112
  %v114 = vrot.slane %v51, 1
  %v115 = vsel %vm106, %v112, %v114
  %v116 = vrot.slane %v52, 1
  %v117 = vsel %vm106, %v114, %v116
  %v119 = vsel %vm106, %v116, 0.0
  %vm120 = vcmask 1045504
  %v121 = vrot.slane %v47, 2
  %v122 = vrot.slane %v48, 2
  %v123 = vsel %vm120, %v121, %v122
  %v124 = vrot.slane %v49, 2
  %v125 = vsel %vm120, %v122, %v124
  %v126 = vrot.slane %v50, 2
  %v127 = vsel %vm120, %v124, %v126
  %v128 = vrot.slane %v51, 2
  %v129 = vsel %vm120, %v126, %v128
  %v130 = vrot.slane %v52, 2
  %v131 = vsel %vm120, %v128, %v130
  %v133 = vsel %vm120, %v130, 0.0
  %vm134 = vcmask 1044480
  %v135 = vrot.slane %v47, 3
  %v136 = vrot.slane %v48, 3
  %v137 = vsel %vm134, %v135, %v136
  %v138 = vrot.slane %v49, 3
  %v139 = vsel %vm134, %v136, %v138
  %v140 = vrot.slane %v50, 3
  %v141 = vsel %vm134, %v138, %v140
  %v142 = vrot.slane %v51, 3
  %v143 = vsel %vm134, %v140, %v142
  %v144 = vrot.slane %v52, 3
  %v145 = vsel %vm134, %v142, %v144
  %v147 = vsel %vm134, %v144, 0.0
  %149 = vrot.lane.b32.xlu0 %v91, 4
  %v150 = vpop.permute.xlu0 %149
  %151 = vrot.lane.b32.xlu0 %v81, 4
  %v152 = vpop.permute.xlu0 %151
  %153 = vrot.lane.b32.xlu0 %v83, 4
  %v154 = vpop.permute.xlu0 %153
  %155 = vrot.lane.b32.xlu0 %v85, 4
  %v156 = vpop.permute.xlu0 %155
  %157 = vrot.lane.b32.xlu0 %v87, 4
  %v158 = vpop.permute.xlu0 %157
  %159 = vrot.lane.b32.xlu0 %v89, 4
  %v160 = vpop.permute.xlu0 %159
  %168 = vrot.lane.b32.xlu0 %v105, 8
  %v169 = vpop.permute.xlu0 %168
  %170 = vrot.lane.b32.xlu0 %v95, 8
  %v171 = vpop.permute.xlu0 %170
  %172 = vrot.lane.b32.xlu0 %v97, 8
  %v173 = vpop.permute.xlu0 %172
  %174 = vrot.lane.b32.xlu0 %v99, 8
  %v175 = vpop.permute.xlu0 %174
  %176 = vrot.lane.b32.xlu0 %v101, 8
  %v177 = vpop.permute.xlu0 %176
  %178 = vrot.lane.b32.xlu0 %v103, 8
  %v179 = vpop.permute.xlu0 %178
  %186 = vrot.lane.b32.xlu0 %v47, 12
  %v187 = vpop.permute.xlu0 %186
  %188 = vrot.lane.b32.xlu0 %v48, 12
  %v189 = vpop.permute.xlu0 %188
  %190 = vrot.lane.b32.xlu0 %v49, 12
  %v191 = vpop.permute.xlu0 %190
  %192 = vrot.lane.b32.xlu0 %v50, 12
  %v193 = vpop.permute.xlu0 %192
  %194 = vrot.lane.b32.xlu0 %v51, 12
  %v195 = vpop.permute.xlu0 %194
  %196 = vrot.lane.b32.xlu0 %v52, 12
  %v197 = vpop.permute.xlu0 %196
  %205 = vrot.lane.b32.xlu0 %v109, 16
  %v206 = vpop.permute.xlu0 %205
  %207 = vrot.lane.b32.xlu0 %v111, 16
  %v208 = vpop.permute.xlu0 %207
  %209 = vrot.lane.b32.xlu0 %v113, 16
  %v210 = vpop.permute.xlu0 %209
  %211 = vrot.lane.b32.xlu0 %v115, 16
  %v212 = vpop.permute.xlu0 %211
  %213 = vrot.lane.b32.xlu0 %v117, 16
  %v214 = vpop.permute.xlu0 %213
  %215 = vrot.lane.b32.xlu0 %v119, 16
  %v216 = vpop.permute.xlu0 %215
  %224 = vrot.lane.b32.xlu0 %v123, 20
  %v225 = vpop.permute.xlu0 %224
  %226 = vrot.lane.b32.xlu0 %v125, 20
  %v227 = vpop.permute.xlu0 %226
  %228 = vrot.lane.b32.xlu0 %v127, 20
  %v229 = vpop.permute.xlu0 %228
  %230 = vrot.lane.b32.xlu0 %v129, 20
  %v231 = vpop.permute.xlu0 %230
  %232 = vrot.lane.b32.xlu0 %v131, 20
  %v233 = vpop.permute.xlu0 %232
  %234 = vrot.lane.b32.xlu0 %v133, 20
  %v235 = vpop.permute.xlu0 %234
  %243 = vrot.lane.b32.xlu0 %v137, 24
  %v244 = vpop.permute.xlu0 %243
  %245 = vrot.lane.b32.xlu0 %v139, 24
  %v246 = vpop.permute.xlu0 %245
  %247 = vrot.lane.b32.xlu0 %v141, 24
  %v248 = vpop.permute.xlu0 %247
  %249 = vrot.lane.b32.xlu0 %v143, 24
  %v250 = vpop.permute.xlu0 %249
  %251 = vrot.lane.b32.xlu0 %v145, 24
  %v252 = vpop.permute.xlu0 %251
  %253 = vrot.lane.b32.xlu0 %v147, 24
  %v254 = vpop.permute.xlu0 %253
  %vm261 = vcmask 31744
  %v262 = vsel %vm261, %v77, %v150
  %v263 = vsel %vm261, %v62, %v152
  %v264 = vsel %vm261, %v64, %v154
  %v265 = vsel %vm261, %v66, %v156
  %v266 = vsel %vm261, %v68, %v158
  %v267 = vsel %vm261, %v70, %v160
  %vm268 = vcmask 64512
  %v269 = vsel %vm268, %v262, %v169
  %v270 = vsel %vm268, %v263, %v171
  %v271 = vsel %vm268, %v264, %v173
  %v272 = vsel %vm268, %v265, %v175
  %v273 = vsel %vm268, %v266, %v177
  %v274 = vsel %vm268, %v267, %v179
  %vm275 = vcmask 97280
  %v276 = vsel %vm275, %v269, %v187
  %v277 = vsel %vm275, %v270, %v189
  %v278 = vsel %vm275, %v271, %v191
  %v279 = vsel %vm275, %v272, %v193
  %v280 = vsel %vm275, %v273, %v195
  %v281 = vsel %vm275, %v274, %v197
  %vm282 = vcmask 130048
  %v283 = vsel %vm282, %v276, %v206
  %v284 = vsel %vm282, %v277, %v208
  %v285 = vsel %vm282, %v278, %v210
  %v286 = vsel %vm282, %v279, %v212
  %v287 = vsel %vm282, %v280, %v214
  %v288 = vsel %vm282, %v281, %v216
  %vm289 = vcmask 162816
  %v290 = vsel %vm289, %v283, %v225
  %v291 = vsel %vm289, %v284, %v227
  %v292 = vsel %vm289, %v285, %v229
  %v293 = vsel %vm289, %v286, %v231
  %v294 = vsel %vm289, %v287, %v233
  %v295 = vsel %vm289, %v288, %v235
  %vm296 = vcmask 195584
  %v297 = vsel %vm296, %v290, %v244
  %v298 = vsel %vm296, %v291, %v246
  %v299 = vsel %vm296, %v292, %v248
  %v300 = vsel %vm296, %v293, %v250
  %v301 = vsel %vm296, %v294, %v252
  %v302 = vsel %vm296, %v295, %v254
  %v303 = vld [vmem:[%s4] sm:$0xff]
  %v304 = vld [vmem:[%s4 + $0x8] sm:$0xff]
  %v305 = vld [vmem:[%s4 + $0x10] sm:$0xff]
  %v306 = vld [vmem:[%s4 + $0x18] sm:$0xf]
  %v307 = vld [vmem:[%s2] sm:$0x1]
  %v308 = vlaneseq
  %v309 = vshrl.u32 %v308, 7
  %v310 = vsub.s32 0, %v309
  %v311 = vrot.slane %v307, %v310
  %vm312 = vcmask 228352
  %v314 = vsel %vm312, %v297, 0
  %v317 = vsel %vm312, %v298, 0
  %v320 = vsel %vm312, %v299, 0
  %v323 = vsel %vm312, %v300, 0
  %v326 = vsel %vm312, %v301, 0
  %v329 = vsel %vm312, %v302, 0
  %vm331 = vcmask 1043456
  %v333 = vsel %vm331, %v306, 0
  %335 = vmatprep.subr.mxu0 0.0
  %336 = vmatpush1.msra.mxu0 0.0
  %337 = vmatprep.subr.mxu0 0.0
  %338 = vmatpush1.msra.mxu0 0.0
  %339 = vmatprep.subr.mxu0 0.0
  %340 = vmatpush1.msra.mxu0 0.0
  %341 = vmatprep.subr.mxu0 0.0
  %342 = vmatpush1.msra.mxu0 0.0
  %343 = vmatprep.subr.mxu0 0.0
  %344 = vmatpush1.msra.mxu0 0.0
  %345 = vmatprep.subr.mxu0 0.0
  %346 = vmatpush1.msra.mxu0 0.0
  %347 = vmatprep.subr.mxu0 0.0
  %348 = vmatpush1.msra.mxu0 0.0
  %349 = vmatprep.subr.mxu0 0.0
  %350 = vmatpush1.msra.mxu0 0.0
  %351 = vmatprep.subr.mxu0 0.0
  %352 = vmatpush1.msra.mxu0 0.0
  %353 = vmatprep.subr.mxu0 0.0
  %354 = vmatpush1.msra.mxu0 0.0
  %355 = vmatprep.subr.mxu0 0.0
  %356 = vmatpush1.msra.mxu0 0.0
  %357 = vmatprep.subr.mxu0 0.0
  %358 = vmatpush1.msra.mxu0 0.0
  %359 = vmatprep.subr.mxu0 0.0
  %360 = vmatpush1.msra.mxu0 %v333
  %361 = vmatprep.subr.mxu0 0.0
  %362 = vmatpush1.msra.mxu0 %v305
  %363 = vmatprep.subr.mxu0 0.0
  %364 = vmatpush1.msra.mxu0 %v304
  %365 = vmatprep.subr.mxu0 0.0
  %366 = vmatpush1.msra.mxu0 %v303
  %367 = vmatprep.subr.mxu0 0.0
  %368 = vmatpush2.msra.mxu0 0.0
  %369 = vmatprep.subr.mxu0 0.0
  %370 = vmatpush2.msra.mxu0 0.0
  %371 = vmatprep.subr.mxu0 0.0
  %372 = vmatpush2.msra.mxu0 0.0
  %373 = vmatprep.subr.mxu0 0.0
  %374 = vmatpush2.msra.mxu0 0.0
  %375 = vmatprep.subr.mxu0 0.0
  %376 = vmatpush2.msra.mxu0 0.0
  %377 = vmatprep.subr.mxu0 0.0
  %378 = vmatpush2.msra.mxu0 0.0
  %379 = vmatprep.subr.mxu0 0.0
  %380 = vmatpush2.msra.mxu0 0.0
  %381 = vmatprep.subr.mxu0 0.0
  %382 = vmatpush2.msra.mxu0 0.0
  %383 = vmatprep.subr.mxu0 0.0
  %384 = vmatpush2.msra.mxu0 0.0
  %385 = vmatprep.subr.mxu0 0.0
  %386 = vmatpush2.msra.mxu0 0.0
  %387 = vmatprep.subr.mxu0 0.0
  %388 = vmatpush2.msra.mxu0 0.0
  %389 = vmatprep.subr.mxu0 0.0
  %390 = vmatpush2.msra.mxu0 0.0
  %391 = vmatprep.subr.mxu0 0.0
  %392 = vmatpush2.msra.mxu0 0.0
  %393 = vmatprep.subr.mxu0 0.0
  %394 = vmatpush2.msra.mxu0 0.0
  %395 = vmatprep.subr.mxu0 0.0
  %396 = vmatpush2.msra.mxu0 0.0
  %397 = vmatprep.subr.mxu0 0.0
  %398 = vmatpush2.msra.mxu0 0.0
  %399 = vmatprep.mubr.f32.mxu0 0.0
  %400 = vmatmul.mubr.f32.gmra.mxu0 %v314
  %v401 = vpop.f32.mrf.mxu0
  %v402 = vadd.f32 %v311, %v401
  %v403 = vpop.f32.mrf.mxu0
  %404 = vmatprep.mubr.f32.mxu0 0.0
  %405 = vmatmul.mubr.f32.gmra.mxu0 %v317
  %v406 = vpop.f32.mrf.mxu0
  %v407 = vadd.f32 %v311, %v406
  %v408 = vpop.f32.mrf.mxu0
  %409 = vmatprep.mubr.f32.mxu0 0.0
  %410 = vmatmul.mubr.f32.gmra.mxu0 %v320
  %v411 = vpop.f32.mrf.mxu0
  %v412 = vadd.f32 %v311, %v411
  %v413 = vpop.f32.mrf.mxu0
  %414 = vmatprep.mubr.f32.mxu0 0.0
  %415 = vmatmul.mubr.f32.gmra.mxu0 %v323
  %v416 = vpop.f32.mrf.mxu0
  %v417 = vadd.f32 %v311, %v416
  %v418 = vpop.f32.mrf.mxu0
  %419 = vmatprep.mubr.f32.mxu0 0.0
  %420 = vmatmul.mubr.f32.gmra.mxu0 %v326
  %v421 = vpop.f32.mrf.mxu0
  %v422 = vadd.f32 %v311, %v421
  %v423 = vpop.f32.mrf.mxu0
  %424 = vmatprep.mubr.f32.mxu0 0.0
  %425 = vmatmul.mubr.f32.gmra.mxu0 %v329
  %v426 = vpop.f32.mrf.mxu0
  %v427 = vadd.f32 %v311, %v426
  %v428 = vpop.f32.mrf.mxu0
  %429 = vdwg.mxu0
  %v430 = vmax.f32 %v402, 0.0
  %v431 = vmax.f32 %v407, 0.0
  %v432 = vmax.f32 %v412, 0.0
  %v433 = vmax.f32 %v417, 0.0
  %v434 = vmax.f32 %v422, 0.0
  %v435 = vmax.f32 %v427, 0.0
  %v436 = vld [vmem:[%s5] sm:$0xff]
  %v437 = vld [vmem:[%s5 + $0x8] sm:$0xff]
  %v438 = vld [vmem:[%s5 + $0x10] sm:$0xff]
  %v439 = vld [vmem:[%s5 + $0x18] sm:$0xff]
  %v440 = vld [vmem:[%s2 + $0x1] sm:$0x1]
  %v441 = vlaneseq
  %v442 = vshrl.u32 %v441, 7
  %v443 = vsub.s32 0, %v442
  %v444 = vrot.slane %v440, %v443
  %vm445 = vcmask 261120
  %v447 = vsel %vm445, %v430, 0
  %v450 = vsel %vm445, %v431, 0
  %v453 = vsel %vm445, %v432, 0
  %v456 = vsel %vm445, %v433, 0
  %v459 = vsel %vm445, %v434, 0
  %v462 = vsel %vm445, %v435, 0
  %464 = vmatprep.subr.mxu0 0.0
  %465 = vmatpush1.msra.mxu0 0.0
  %466 = vmatprep.subr.mxu0 0.0
  %467 = vmatpush1.msra.mxu0 0.0
  %468 = vmatprep.subr.mxu0 0.0
  %469 = vmatpush1.msra.mxu0 0.0
  %470 = vmatprep.subr.mxu0 0.0
  %471 = vmatpush1.msra.mxu0 0.0
  %472 = vmatprep.subr.mxu0 0.0
  %473 = vmatpush1.msra.mxu0 0.0
  %474 = vmatprep.subr.mxu0 0.0
  %475 = vmatpush1.msra.mxu0 0.0
  %476 = vmatprep.subr.mxu0 0.0
  %477 = vmatpush1.msra.mxu0 0.0
  %478 = vmatprep.subr.mxu0 0.0
  %479 = vmatpush1.msra.mxu0 0.0
  %480 = vmatprep.subr.mxu0 0.0
  %481 = vmatpush1.msra.mxu0 0.0
  %482 = vmatprep.subr.mxu0 0.0
  %483 = vmatpush1.msra.mxu0 0.0
  %484 = vmatprep.subr.mxu0 0.0
  %485 = vmatpush1.msra.mxu0 0.0
  %486 = vmatprep.subr.mxu0 0.0
  %487 = vmatpush1.msra.mxu0 0.0
  %488 = vmatprep.subr.mxu0 0.0
  %489 = vmatpush1.msra.mxu0 %v439
  %490 = vmatprep.subr.mxu0 0.0
  %491 = vmatpush1.msra.mxu0 %v438
  %492 = vmatprep.subr.mxu0 0.0
  %493 = vmatpush1.msra.mxu0 %v437
  %494 = vmatprep.subr.mxu0 0.0
  %495 = vmatpush1.msra.mxu0 %v436
  %496 = vmatprep.subr.mxu0 0.0
  %497 = vmatpush2.msra.mxu0 0.0
  %498 = vmatprep.subr.mxu0 0.0
  %499 = vmatpush2.msra.mxu0 0.0
  %500 = vmatprep.subr.mxu0 0.0
  %501 = vmatpush2.msra.mxu0 0.0
  %502 = vmatprep.subr.mxu0 0.0
  %503 = vmatpush2.msra.mxu0 0.0
  %504 = vmatprep.subr.mxu0 0.0
  %505 = vmatpush2.msra.mxu0 0.0
  %506 = vmatprep.subr.mxu0 0.0
  %507 = vmatpush2.msra.mxu0 0.0
  %508 = vmatprep.subr.mxu0 0.0
  %509 = vmatpush2.msra.mxu0 0.0
  %510 = vmatprep.subr.mxu0 0.0
  %511 = vmatpush2.msra.mxu0 0.0
  %512 = vmatprep.subr.mxu0 0.0
  %513 = vmatpush2.msra.mxu0 0.0
  %514 = vmatprep.subr.mxu0 0.0
  %515 = vmatpush2.msra.mxu0 0.0
  %516 = vmatprep.subr.mxu0 0.0
  %517 = vmatpush2.msra.mxu0 0.0
  %518 = vmatprep.subr.mxu0 0.0
  %519 = vmatpush2.msra.mxu0 0.0
  %520 = vmatprep.subr.mxu0 0.0
  %521 = vmatpush2.msra.mxu0 0.0
  %522 = vmatprep.subr.mxu0 0.0
  %523 = vmatpush2.msra.mxu0 0.0
  %524 = vmatprep.subr.mxu0 0.0
  %525 = vmatpush2.msra.mxu0 0.0
  %526 = vmatprep.subr.mxu0 0.0
  %527 = vmatpush2.msra.mxu0 0.0
  %528 = vmatprep.mubr.f32.mxu0 0.0
  %529 = vmatmul.mubr.f32.gmra.mxu0 %v447
  %v530 = vpop.f32.mrf.mxu0
  %v531 = vadd.f32 %v444, %v530
  %v532 = vpop.f32.mrf.mxu0
  %533 = vmatprep.mubr.f32.mxu0 0.0
  %534 = vmatmul.mubr.f32.gmra.mxu0 %v450
  %v535 = vpop.f32.mrf.mxu0
  %v536 = vadd.f32 %v444, %v535
  %v537 = vpop.f32.mrf.mxu0
  %538 = vmatprep.mubr.f32.mxu0 0.0
  %539 = vmatmul.mubr.f32.gmra.mxu0 %v453
  %v540 = vpop.f32.mrf.mxu0
  %v541 = vadd.f32 %v444, %v540
  %v542 = vpop.f32.mrf.mxu0
  %543 = vmatprep.mubr.f32.mxu0 0.0
  %544 = vmatmul.mubr.f32.gmra.mxu0 %v456
  %v545 = vpop.f32.mrf.mxu0
  %v546 = vadd.f32 %v444, %v545
  %v547 = vpop.f32.mrf.mxu0
  %548 = vmatprep.mubr.f32.mxu0 0.0
  %549 = vmatmul.mubr.f32.gmra.mxu0 %v459
  %v550 = vpop.f32.mrf.mxu0
  %v551 = vadd.f32 %v444, %v550
  %v552 = vpop.f32.mrf.mxu0
  %553 = vmatprep.mubr.f32.mxu0 0.0
  %554 = vmatmul.mubr.f32.gmra.mxu0 %v462
  %v555 = vpop.f32.mrf.mxu0
  %v556 = vadd.f32 %v444, %v555
  %v557 = vpop.f32.mrf.mxu0
  %558 = vdwg.mxu0
  %v559 = vmax.f32 %v531, 0.0
  %v560 = vmax.f32 %v536, 0.0
  %v561 = vmax.f32 %v541, 0.0
  %v562 = vmax.f32 %v546, 0.0
  %v563 = vmax.f32 %v551, 0.0
  %v564 = vmax.f32 %v556, 0.0
  %566 = vset.pattern.permute.xlu0 0
  %567 = vperm.xlu0 %566, %v41
  %v568 = vpop.permute.xlu0 %567
  %571 = vset.pattern.permute.xlu0 0
  %572 = vperm.xlu0 %571, %v42
  %v573 = vpop.permute.xlu0 %572
  %576 = vset.pattern.permute.xlu0 0
  %577 = vperm.xlu0 %576, %v43
  %v578 = vpop.permute.xlu0 %577
  %581 = vset.pattern.permute.xlu0 0
  %582 = vperm.xlu0 %581, %v44
  %v583 = vpop.permute.xlu0 %582
  %586 = vset.pattern.permute.xlu0 0
  %587 = vperm.xlu0 %586, %v45
  %v588 = vpop.permute.xlu0 %587
  %591 = vset.pattern.permute.xlu0 0
  %592 = vperm.xlu0 %591, %v46
  %v593 = vpop.permute.xlu0 %592
  %v595 = vmul.f32 %v559, %v568
  %v596 = vmul.f32 %v560, %v573
  %v597 = vmul.f32 %v561, %v578
  %v598 = vmul.f32 %v562, %v583
  %v599 = vmul.f32 %v563, %v588
  %v600 = vmul.f32 %v564, %v593
  %v607 = vrot.slane %v595, 7
  %v608 = vrot.slane %v596, 7
  %v609 = vsel %vm92, %v607, %v608
  %v610 = vrot.slane %v597, 7
  %v611 = vsel %vm92, %v608, %v610
  %v612 = vrot.slane %v598, 7
  %v613 = vsel %vm92, %v610, %v612
  %v614 = vrot.slane %v599, 7
  %v615 = vsel %vm92, %v612, %v614
  %v616 = vrot.slane %v600, 7
  %v617 = vsel %vm92, %v614, %v616
  %v624 = vsel %vm92, 0.0, %v607
  %v625 = vrot.slane %v595, 1
  %v626 = vrot.slane %v596, 1
  %v627 = vsel %vm106, %v625, %v626
  %v628 = vrot.slane %v597, 1
  %v629 = vsel %vm106, %v626, %v628
  %v630 = vrot.slane %v598, 1
  %v631 = vsel %vm106, %v628, %v630
  %v632 = vrot.slane %v599, 1
  %v633 = vsel %vm106, %v630, %v632
  %v634 = vrot.slane %v600, 1
  %v635 = vsel %vm106, %v632, %v634
  %v637 = vsel %vm106, %v634, 0.0
  %638 = vrot.lane.b32.xlu0 %v595, 32
  %v639 = vpop.permute.xlu0 %638
  %640 = vrot.lane.b32.xlu0 %v596, 32
  %v641 = vpop.permute.xlu0 %640
  %642 = vrot.lane.b32.xlu0 %v597, 32
  %v643 = vpop.permute.xlu0 %642
  %644 = vrot.lane.b32.xlu0 %v598, 32
  %v645 = vpop.permute.xlu0 %644
  %646 = vrot.lane.b32.xlu0 %v599, 32
  %v647 = vpop.permute.xlu0 %646
  %648 = vrot.lane.b32.xlu0 %v600, 32
  %v649 = vpop.permute.xlu0 %648
  %657 = vrot.lane.b32.xlu0 %v627, 64
  %v658 = vpop.permute.xlu0 %657
  %659 = vrot.lane.b32.xlu0 %v629, 64
  %v660 = vpop.permute.xlu0 %659
  %661 = vrot.lane.b32.xlu0 %v631, 64
  %v662 = vpop.permute.xlu0 %661
  %663 = vrot.lane.b32.xlu0 %v633, 64
  %v664 = vpop.permute.xlu0 %663
  %665 = vrot.lane.b32.xlu0 %v635, 64
  %v666 = vpop.permute.xlu0 %665
  %667 = vrot.lane.b32.xlu0 %v637, 64
  %v668 = vpop.permute.xlu0 %667
  %v675 = vsel %vm445, %v624, %v639
  %v676 = vsel %vm445, %v609, %v641
  %v677 = vsel %vm445, %v611, %v643
  %v678 = vsel %vm445, %v613, %v645
  %v679 = vsel %vm445, %v615, %v647
  %v680 = vsel %vm445, %v617, %v649
  %vm681 = vcmask 523264
  %v682 = vsel %vm681, %v675, %v658
  %v683 = vsel %vm681, %v676, %v660
  %v684 = vsel %vm681, %v677, %v662
  %v685 = vsel %vm681, %v678, %v664
  %v686 = vsel %vm681, %v679, %v666
  %v687 = vsel %vm681, %v680, %v668
  %v688 = vld [vmem:[%s6] sm:$0xff]
  %v689 = vld [vmem:[%s6 + $0x8] sm:$0xff]
  %v690 = vld [vmem:[%s6 + $0x10] sm:$0xff]
  %v691 = vld [vmem:[%s6 + $0x18] sm:$0xff]
  %v692 = vld [vmem:[%s6 + $0x20] sm:$0xff]
  %v693 = vld [vmem:[%s6 + $0x28] sm:$0xff]
  %v694 = vld [vmem:[%s6 + $0x30] sm:$0xff]
  %v695 = vld [vmem:[%s6 + $0x38] sm:$0xff]
  %v696 = vld [vmem:[%s6 + $0x40] sm:$0xff]
  %v697 = vld [vmem:[%s6 + $0x48] sm:$0xff]
  %v698 = vld [vmem:[%s6 + $0x50] sm:$0xff]
  %v699 = vld [vmem:[%s6 + $0x58] sm:$0xff]
  %v700 = vld [vmem:[%s2 + $0x2] sm:$0x1]
  %v701 = vlaneseq
  %v702 = vshrl.u32 %v701, 7
  %v703 = vsub.s32 0, %v702
  %v704 = vrot.slane %v700, %v703
  %vm705 = vcmask 785408
  %v707 = vsel %vm705, %v682, 0
  %v710 = vsel %vm705, %v683, 0
  %v713 = vsel %vm705, %v684, 0
  %v716 = vsel %vm705, %v685, 0
  %v719 = vsel %vm705, %v686, 0
  %v722 = vsel %vm705, %v687, 0
  %724 = vmatprep.subr.mxu0 0.0
  %725 = vmatpush1.msra.mxu0 0.0
  %726 = vmatprep.subr.mxu0 0.0
  %727 = vmatpush1.msra.mxu0 0.0
  %728 = vmatprep.subr.mxu0 0.0
  %729 = vmatpush1.msra.mxu0 0.0
  %730 = vmatprep.subr.mxu0 0.0
  %731 = vmatpush1.msra.mxu0 0.0
  %732 = vmatprep.subr.mxu0 0.0
  %733 = vmatpush1.msra.mxu0 %v699
  %734 = vmatprep.subr.mxu0 0.0
  %735 = vmatpush1.msra.mxu0 %v698
  %736 = vmatprep.subr.mxu0 0.0
  %737 = vmatpush1.msra.mxu0 %v697
  %738 = vmatprep.subr.mxu0 0.0
  %739 = vmatpush1.msra.mxu0 %v696
  %740 = vmatprep.subr.mxu0 0.0
  %741 = vmatpush1.msra.mxu0 %v695
  %742 = vmatprep.subr.mxu0 0.0
  %743 = vmatpush1.msra.mxu0 %v694
  %744 = vmatprep.subr.mxu0 0.0
  %745 = vmatpush1.msra.mxu0 %v693
  %746 = vmatprep.subr.mxu0 0.0
  %747 = vmatpush1.msra.mxu0 %v692
  %748 = vmatprep.subr.mxu0 0.0
  %749 = vmatpush1.msra.mxu0 %v691
  %750 = vmatprep.subr.mxu0 0.0
  %751 = vmatpush1.msra.mxu0 %v690
  %752 = vmatprep.subr.mxu0 0.0
  %753 = vmatpush1.msra.mxu0 %v689
  %754 = vmatprep.subr.mxu0 0.0
  %755 = vmatpush1.msra.mxu0 %v688
  %756 = vmatprep.subr.mxu0 0.0
  %757 = vmatpush2.msra.mxu0 0.0
  %758 = vmatprep.subr.mxu0 0.0
  %759 = vmatpush2.msra.mxu0 0.0
  %760 = vmatprep.subr.mxu0 0.0
  %761 = vmatpush2.msra.mxu0 0.0
  %762 = vmatprep.subr.mxu0 0.0
  %763 = vmatpush2.msra.mxu0 0.0
  %764 = vmatprep.subr.mxu0 0.0
  %765 = vmatpush2.msra.mxu0 0.0
  %766 = vmatprep.subr.mxu0 0.0
  %767 = vmatpush2.msra.mxu0 0.0
  %768 = vmatprep.subr.mxu0 0.0
  %769 = vmatpush2.msra.mxu0 0.0
  %770 = vmatprep.subr.mxu0 0.0
  %771 = vmatpush2.msra.mxu0 0.0
  %772 = vmatprep.subr.mxu0 0.0
  %773 = vmatpush2.msra.mxu0 0.0
  %774 = vmatprep.subr.mxu0 0.0
  %775 = vmatpush2.msra.mxu0 0.0
  %776 = vmatprep.subr.mxu0 0.0
  %777 = vmatpush2.msra.mxu0 0.0
  %778 = vmatprep.subr.mxu0 0.0
  %779 = vmatpush2.msra.mxu0 0.0
  %780 = vmatprep.subr.mxu0 0.0
  %781 = vmatpush2.msra.mxu0 0.0
  %782 = vmatprep.subr.mxu0 0.0
  %783 = vmatpush2.msra.mxu0 0.0
  %784 = vmatprep.subr.mxu0 0.0
  %785 = vmatpush2.msra.mxu0 0.0
  %786 = vmatprep.subr.mxu0 0.0
  %787 = vmatpush2.msra.mxu0 0.0
  %788 = vmatprep.mubr.f32.mxu0 0.0
  %789 = vmatmul.mubr.f32.gmra.mxu0 %v707
  %v790 = vpop.f32.mrf.mxu0
  %v791 = vadd.f32 %v704, %v790
  %v792 = vpop.f32.mrf.mxu0
  %793 = vmatprep.mubr.f32.mxu0 0.0
  %794 = vmatmul.mubr.f32.gmra.mxu0 %v710
  %v795 = vpop.f32.mrf.mxu0
  %v796 = vadd.f32 %v704, %v795
  %v797 = vpop.f32.mrf.mxu0
  %798 = vmatprep.mubr.f32.mxu0 0.0
  %799 = vmatmul.mubr.f32.gmra.mxu0 %v713
  %v800 = vpop.f32.mrf.mxu0
  %v801 = vadd.f32 %v704, %v800
  %v802 = vpop.f32.mrf.mxu0
  %803 = vmatprep.mubr.f32.mxu0 0.0
  %804 = vmatmul.mubr.f32.gmra.mxu0 %v716
  %v805 = vpop.f32.mrf.mxu0
  %v806 = vadd.f32 %v704, %v805
  %v807 = vpop.f32.mrf.mxu0
  %808 = vmatprep.mubr.f32.mxu0 0.0
  %809 = vmatmul.mubr.f32.gmra.mxu0 %v719
  %v810 = vpop.f32.mrf.mxu0
  %v811 = vadd.f32 %v704, %v810
  %v812 = vpop.f32.mrf.mxu0
  %813 = vmatprep.mubr.f32.mxu0 0.0
  %814 = vmatmul.mubr.f32.gmra.mxu0 %v722
  %v815 = vpop.f32.mrf.mxu0
  %v816 = vadd.f32 %v704, %v815
  %v817 = vpop.f32.mrf.mxu0
  %818 = vdwg.mxu0
  %v819 = vmax.f32 %v791, 0.0
  %v820 = vmax.f32 %v796, 0.0
  %v821 = vmax.f32 %v801, 0.0
  %v822 = vmax.f32 %v806, 0.0
  %v823 = vmax.f32 %v811, 0.0
  %v824 = vmax.f32 %v816, 0.0
  %v825 = vld [vmem:[%s7] sm:$0xff]
  %v826 = vld [vmem:[%s7 + $0x8] sm:$0xff]
  %v827 = vld [vmem:[%s7 + $0x10] sm:$0xff]
  %v828 = vld [vmem:[%s7 + $0x18] sm:$0xff]
  %v829 = vld [vmem:[%s2 + $0x3] sm:$0x1]
  %v830 = vlaneseq
  %v831 = vshrl.u32 %v830, 7
  %v832 = vsub.s32 0, %v831
  %v833 = vrot.slane %v829, %v832
  %v835 = vsel %vm445, %v819, 0
  %v838 = vsel %vm445, %v820, 0
  %v841 = vsel %vm445, %v821, 0
  %v844 = vsel %vm445, %v822, 0
  %v847 = vsel %vm445, %v823, 0
  %v850 = vsel %vm445, %v824, 0
  %852 = vmatprep.subr.mxu0 0.0
  %853 = vmatpush1.msra.mxu0 0.0
  %854 = vmatprep.subr.mxu0 0.0
  %855 = vmatpush1.msra.mxu0 0.0
  %856 = vmatprep.subr.mxu0 0.0
  %857 = vmatpush1.msra.mxu0 0.0
  %858 = vmatprep.subr.mxu0 0.0
  %859 = vmatpush1.msra.mxu0 0.0
  %860 = vmatprep.subr.mxu0 0.0
  %861 = vmatpush1.msra.mxu0 0.0
  %862 = vmatprep.subr.mxu0 0.0
  %863 = vmatpush1.msra.mxu0 0.0
  %864 = vmatprep.subr.mxu0 0.0
  %865 = vmatpush1.msra.mxu0 0.0
  %866 = vmatprep.subr.mxu0 0.0
  %867 = vmatpush1.msra.mxu0 0.0
  %868 = vmatprep.subr.mxu0 0.0
  %869 = vmatpush1.msra.mxu0 0.0
  %870 = vmatprep.subr.mxu0 0.0
  %871 = vmatpush1.msra.mxu0 0.0
  %872 = vmatprep.subr.mxu0 0.0
  %873 = vmatpush1.msra.mxu0 0.0
  %874 = vmatprep.subr.mxu0 0.0
  %875 = vmatpush1.msra.mxu0 0.0
  %876 = vmatprep.subr.mxu0 0.0
  %877 = vmatpush1.msra.mxu0 %v828
  %878 = vmatprep.subr.mxu0 0.0
  %879 = vmatpush1.msra.mxu0 %v827
  %880 = vmatprep.subr.mxu0 0.0
  %881 = vmatpush1.msra.mxu0 %v826
  %882 = vmatprep.subr.mxu0 0.0
  %883 = vmatpush1.msra.mxu0 %v825
  %884 = vmatprep.subr.mxu0 0.0
  %885 = vmatpush2.msra.mxu0 0.0
  %886 = vmatprep.subr.mxu0 0.0
  %887 = vmatpush2.msra.mxu0 0.0
  %888 = vmatprep.subr.mxu0 0.0
  %889 = vmatpush2.msra.mxu0 0.0
  %890 = vmatprep.subr.mxu0 0.0
  %891 = vmatpush2.msra.mxu0 0.0
  %892 = vmatprep.subr.mxu0 0.0
  %893 = vmatpush2.msra.mxu0 0.0
  %894 = vmatprep.subr.mxu0 0.0
  %895 = vmatpush2.msra.mxu0 0.0
  %896 = vmatprep.subr.mxu0 0.0
  %897 = vmatpush2.msra.mxu0 0.0
  %898 = vmatprep.subr.mxu0 0.0
  %899 = vmatpush2.msra.mxu0 0.0
  %900 = vmatprep.subr.mxu0 0.0
  %901 = vmatpush2.msra.mxu0 0.0
  %902 = vmatprep.subr.mxu0 0.0
  %903 = vmatpush2.msra.mxu0 0.0
  %904 = vmatprep.subr.mxu0 0.0
  %905 = vmatpush2.msra.mxu0 0.0
  %906 = vmatprep.subr.mxu0 0.0
  %907 = vmatpush2.msra.mxu0 0.0
  %908 = vmatprep.subr.mxu0 0.0
  %909 = vmatpush2.msra.mxu0 0.0
  %910 = vmatprep.subr.mxu0 0.0
  %911 = vmatpush2.msra.mxu0 0.0
  %912 = vmatprep.subr.mxu0 0.0
  %913 = vmatpush2.msra.mxu0 0.0
  %914 = vmatprep.subr.mxu0 0.0
  %915 = vmatpush2.msra.mxu0 0.0
  %916 = vmatprep.mubr.f32.mxu0 0.0
  %917 = vmatmul.mubr.f32.gmra.mxu0 %v835
  %v918 = vpop.f32.mrf.mxu0
  %v919 = vadd.f32 %v833, %v918
  %v920 = vpop.f32.mrf.mxu0
  %921 = vmatprep.mubr.f32.mxu0 0.0
  %922 = vmatmul.mubr.f32.gmra.mxu0 %v838
  %v923 = vpop.f32.mrf.mxu0
  %v924 = vadd.f32 %v833, %v923
  %v925 = vpop.f32.mrf.mxu0
  %926 = vmatprep.mubr.f32.mxu0 0.0
  %927 = vmatmul.mubr.f32.gmra.mxu0 %v841
  %v928 = vpop.f32.mrf.mxu0
  %v929 = vadd.f32 %v833, %v928
  %v930 = vpop.f32.mrf.mxu0
  %931 = vmatprep.mubr.f32.mxu0 0.0
  %932 = vmatmul.mubr.f32.gmra.mxu0 %v844
  %v933 = vpop.f32.mrf.mxu0
  %v934 = vadd.f32 %v833, %v933
  %v935 = vpop.f32.mrf.mxu0
  %936 = vmatprep.mubr.f32.mxu0 0.0
  %937 = vmatmul.mubr.f32.gmra.mxu0 %v847
  %v938 = vpop.f32.mrf.mxu0
  %v939 = vadd.f32 %v833, %v938
  %v940 = vpop.f32.mrf.mxu0
  %941 = vmatprep.mubr.f32.mxu0 0.0
  %942 = vmatmul.mubr.f32.gmra.mxu0 %v850
  %v943 = vpop.f32.mrf.mxu0
  %v944 = vadd.f32 %v833, %v943
  %v945 = vpop.f32.mrf.mxu0
  %946 = vdwg.mxu0
  %v947 = vadd.f32 %v919, %v430
  %v948 = vadd.f32 %v924, %v431
  %v949 = vadd.f32 %v929, %v432
  %v950 = vadd.f32 %v934, %v433
  %v951 = vadd.f32 %v939, %v434
  %v952 = vadd.f32 %v944, %v435
  %v953 = vmax.f32 %v947, 0.0
  %v954 = vmax.f32 %v948, 0.0
  %v955 = vmax.f32 %v949, 0.0
  %v956 = vmax.f32 %v950, 0.0
  %v957 = vmax.f32 %v951, 0.0
  %v958 = vmax.f32 %v952, 0.0
  %v959 = vld [vmem:[%s8] sm:$0xff]
  %v960 = vld [vmem:[%s8 + $0x8] sm:$0xff]
  %v961 = vld [vmem:[%s8 + $0x10] sm:$0xff]
  %v962 = vld [vmem:[%s8 + $0x18] sm:$0xff]
  %v963 = vld [vmem:[%s2 + $0x4] sm:$0x1]
  %v964 = vlaneseq
  %v965 = vshrl.u32 %v964, 7
  %v966 = vsub.s32 0, %v965
  %v967 = vrot.slane %v963, %v966
  %v969 = vsel %vm445, %v953, 0
  %v972 = vsel %vm445, %v954, 0
  %v975 = vsel %vm445, %v955, 0
  %v978 = vsel %vm445, %v956, 0
  %v981 = vsel %vm445, %v957, 0
  %v984 = vsel %vm445, %v958, 0
  %986 = vmatprep.subr.mxu0 0.0
  %987 = vmatpush1.msra.mxu0 0.0
  %988 = vmatprep.subr.mxu0 0.0
  %989 = vmatpush1.msra.mxu0 0.0
  %990 = vmatprep.subr.mxu0 0.0
  %991 = vmatpush1.msra.mxu0 0.0
  %992 = vmatprep.subr.mxu0 0.0
  %993 = vmatpush1.msra.mxu0 0.0
  %994 = vmatprep.subr.mxu0 0.0
  %995 = vmatpush1.msra.mxu0 0.0
  %996 = vmatprep.subr.mxu0 0.0
  %997 = vmatpush1.msra.mxu0 0.0
  %998 = vmatprep.subr.mxu0 0.0
  %999 = vmatpush1.msra.mxu0 0.0
  %1000 = vmatprep.subr.mxu0 0.0
  %1001 = vmatpush1.msra.mxu0 0.0
  %1002 = vmatprep.subr.mxu0 0.0
  %1003 = vmatpush1.msra.mxu0 0.0
  %1004 = vmatprep.subr.mxu0 0.0
  %1005 = vmatpush1.msra.mxu0 0.0
  %1006 = vmatprep.subr.mxu0 0.0
  %1007 = vmatpush1.msra.mxu0 0.0
  %1008 = vmatprep.subr.mxu0 0.0
  %1009 = vmatpush1.msra.mxu0 0.0
  %1010 = vmatprep.subr.mxu0 0.0
  %1011 = vmatpush1.msra.mxu0 %v962
  %1012 = vmatprep.subr.mxu0 0.0
  %1013 = vmatpush1.msra.mxu0 %v961
  %1014 = vmatprep.subr.mxu0 0.0
  %1015 = vmatpush1.msra.mxu0 %v960
  %1016 = vmatprep.subr.mxu0 0.0
  %1017 = vmatpush1.msra.mxu0 %v959
  %1018 = vmatprep.subr.mxu0 0.0
  %1019 = vmatpush2.msra.mxu0 0.0
  %1020 = vmatprep.subr.mxu0 0.0
  %1021 = vmatpush2.msra.mxu0 0.0
  %1022 = vmatprep.subr.mxu0 0.0
  %1023 = vmatpush2.msra.mxu0 0.0
  %1024 = vmatprep.subr.mxu0 0.0
  %1025 = vmatpush2.msra.mxu0 0.0
  %1026 = vmatprep.subr.mxu0 0.0
  %1027 = vmatpush2.msra.mxu0 0.0
  %1028 = vmatprep.subr.mxu0 0.0
  %1029 = vmatpush2.msra.mxu0 0.0
  %1030 = vmatprep.subr.mxu0 0.0
  %1031 = vmatpush2.msra.mxu0 0.0
  %1032 = vmatprep.subr.mxu0 0.0
  %1033 = vmatpush2.msra.mxu0 0.0
  %1034 = vmatprep.subr.mxu0 0.0
  %1035 = vmatpush2.msra.mxu0 0.0
  %1036 = vmatprep.subr.mxu0 0.0
  %1037 = vmatpush2.msra.mxu0 0.0
  %1038 = vmatprep.subr.mxu0 0.0
  %1039 = vmatpush2.msra.mxu0 0.0
  %1040 = vmatprep.subr.mxu0 0.0
  %1041 = vmatpush2.msra.mxu0 0.0
  %1042 = vmatprep.subr.mxu0 0.0
  %1043 = vmatpush2.msra.mxu0 0.0
  %1044 = vmatprep.subr.mxu0 0.0
  %1045 = vmatpush2.msra.mxu0 0.0
  %1046 = vmatprep.subr.mxu0 0.0
  %1047 = vmatpush2.msra.mxu0 0.0
  %1048 = vmatprep.subr.mxu0 0.0
  %1049 = vmatpush2.msra.mxu0 0.0
  %1050 = vmatprep.mubr.f32.mxu0 0.0
  %1051 = vmatmul.mubr.f32.gmra.mxu0 %v969
  %v1052 = vpop.f32.mrf.mxu0
  %v1053 = vadd.f32 %v967, %v1052
  %v1054 = vpop.f32.mrf.mxu0
  %1055 = vmatprep.mubr.f32.mxu0 0.0
  %1056 = vmatmul.mubr.f32.gmra.mxu0 %v972
  %v1057 = vpop.f32.mrf.mxu0
  %v1058 = vadd.f32 %v967, %v1057
  %v1059 = vpop.f32.mrf.mxu0
  %1060 = vmatprep.mubr.f32.mxu0 0.0
  %1061 = vmatmul.mubr.f32.gmra.mxu0 %v975
  %v1062 = vpop.f32.mrf.mxu0
  %v1063 = vadd.f32 %v967, %v1062
  %v1064 = vpop.f32.mrf.mxu0
  %1065 = vmatprep.mubr.f32.mxu0 0.0
  %1066 = vmatmul.mubr.f32.gmra.mxu0 %v978
  %v1067 = vpop.f32.mrf.mxu0
  %v1068 = vadd.f32 %v967, %v1067
  %v1069 = vpop.f32.mrf.mxu0
  %1070 = vmatprep.mubr.f32.mxu0 0.0
  %1071 = vmatmul.mubr.f32.gmra.mxu0 %v981
  %v1072 = vpop.f32.mrf.mxu0
  %v1073 = vadd.f32 %v967, %v1072
  %v1074 = vpop.f32.mrf.mxu0
  %1075 = vmatprep.mubr.f32.mxu0 0.0
  %1076 = vmatmul.mubr.f32.gmra.mxu0 %v984
  %v1077 = vpop.f32.mrf.mxu0
  %v1078 = vadd.f32 %v967, %v1077
  %v1079 = vpop.f32.mrf.mxu0
  %1080 = vdwg.mxu0
  %v1081 = vmax.f32 %v1053, 0.0
  %v1082 = vmax.f32 %v1058, 0.0
  %v1083 = vmax.f32 %v1063, 0.0
  %v1084 = vmax.f32 %v1068, 0.0
  %v1085 = vmax.f32 %v1073, 0.0
  %v1086 = vmax.f32 %v1078, 0.0
  %v1087 = vmul.f32 %v1081, %v568
  %v1088 = vmul.f32 %v1082, %v573
  %v1089 = vmul.f32 %v1083, %v578
  %v1090 = vmul.f32 %v1084, %v583
  %v1091 = vmul.f32 %v1085, %v588
  %v1092 = vmul.f32 %v1086, %v593
  %v1099 = vrot.slane %v1087, 7
  %v1100 = vrot.slane %v1088, 7
  %v1101 = vsel %vm92, %v1099, %v1100
  %v1102 = vrot.slane %v1089, 7
  %v1103 = vsel %vm92, %v1100, %v1102
  %v1104 = vrot.slane %v1090, 7
  %v1105 = vsel %vm92, %v1102, %v1104
  %v1106 = vrot.slane %v1091, 7
  %v1107 = vsel %vm92, %v1104, %v1106
  %v1108 = vrot.slane %v1092, 7
  %v1109 = vsel %vm92, %v1106, %v1108
  %v1116 = vsel %vm92, 0.0, %v1099
  %v1117 = vrot.slane %v1087, 1
  %v1118 = vrot.slane %v1088, 1
  %v1119 = vsel %vm106, %v1117, %v1118
  %v1120 = vrot.slane %v1089, 1
  %v1121 = vsel %vm106, %v1118, %v1120
  %v1122 = vrot.slane %v1090, 1
  %v1123 = vsel %vm106, %v1120, %v1122
  %v1124 = vrot.slane %v1091, 1
  %v1125 = vsel %vm106, %v1122, %v1124
  %v1126 = vrot.slane %v1092, 1
  %v1127 = vsel %vm106, %v1124, %v1126
  %v1129 = vsel %vm106, %v1126, 0.0
  %1130 = vrot.lane.b32.xlu0 %v1087, 32
  %v1131 = vpop.permute.xlu0 %1130
  %1132 = vrot.lane.b32.xlu0 %v1088, 32
  %v1133 = vpop.permute.xlu0 %1132
  %1134 = vrot.lane.b32.xlu0 %v1089, 32
  %v1135 = vpop.permute.xlu0 %1134
  %1136 = vrot.lane.b32.xlu0 %v1090, 32
  %v1137 = vpop.permute.xlu0 %1136
  %1138 = vrot.lane.b32.xlu0 %v1091, 32
  %v1139 = vpop.permute.xlu0 %1138
  %1140 = vrot.lane.b32.xlu0 %v1092, 32
  %v1141 = vpop.permute.xlu0 %1140
  %1149 = vrot.lane.b32.xlu0 %v1119, 64
  %v1150 = vpop.permute.xlu0 %1149
  %1151 = vrot.lane.b32.xlu0 %v1121, 64
  %v1152 = vpop.permute.xlu0 %1151
  %1153 = vrot.lane.b32.xlu0 %v1123, 64
  %v1154 = vpop.permute.xlu0 %1153
  %1155 = vrot.lane.b32.xlu0 %v1125, 64
  %v1156 = vpop.permute.xlu0 %1155
  %1157 = vrot.lane.b32.xlu0 %v1127, 64
  %v1158 = vpop.permute.xlu0 %1157
  %1159 = vrot.lane.b32.xlu0 %v1129, 64
  %v1160 = vpop.permute.xlu0 %1159
  %v1167 = vsel %vm445, %v1116, %v1131
  %v1168 = vsel %vm445, %v1101, %v1133
  %v1169 = vsel %vm445, %v1103, %v1135
  %v1170 = vsel %vm445, %v1105, %v1137
  %v1171 = vsel %vm445, %v1107, %v1139
  %v1172 = vsel %vm445, %v1109, %v1141
  %v1173 = vsel %vm681, %v1167, %v1150
  %v1174 = vsel %vm681, %v1168, %v1152
  %v1175 = vsel %vm681, %v1169, %v1154
  %v1176 = vsel %vm681, %v1170, %v1156
  %v1177 = vsel %vm681, %v1171, %v1158
  %v1178 = vsel %vm681, %v1172, %v1160
  %v1179 = vld [vmem:[%s9] sm:$0xff]
  %v1180 = vld [vmem:[%s9 + $0x8] sm:$0xff]
  %v1181 = vld [vmem:[%s9 + $0x10] sm:$0xff]
  %v1182 = vld [vmem:[%s9 + $0x18] sm:$0xff]
  %v1183 = vld [vmem:[%s9 + $0x20] sm:$0xff]
  %v1184 = vld [vmem:[%s9 + $0x28] sm:$0xff]
  %v1185 = vld [vmem:[%s9 + $0x30] sm:$0xff]
  %v1186 = vld [vmem:[%s9 + $0x38] sm:$0xff]
  %v1187 = vld [vmem:[%s9 + $0x40] sm:$0xff]
  %v1188 = vld [vmem:[%s9 + $0x48] sm:$0xff]
  %v1189 = vld [vmem:[%s9 + $0x50] sm:$0xff]
  %v1190 = vld [vmem:[%s9 + $0x58] sm:$0xff]
  %v1191 = vld [vmem:[%s2 + $0x5] sm:$0x1]
  %v1192 = vlaneseq
  %v1193 = vshrl.u32 %v1192, 7
  %v1194 = vsub.s32 0, %v1193
  %v1195 = vrot.slane %v1191, %v1194
  %v1197 = vsel %vm705, %v1173, 0
  %v1200 = vsel %vm705, %v1174, 0
  %v1203 = vsel %vm705, %v1175, 0
  %v1206 = vsel %vm705, %v1176, 0
  %v1209 = vsel %vm705, %v1177, 0
  %v1212 = vsel %vm705, %v1178, 0
  %1214 = vmatprep.subr.mxu0 0.0
  %1215 = vmatpush1.msra.mxu0 0.0
  %1216 = vmatprep.subr.mxu0 0.0
  %1217 = vmatpush1.msra.mxu0 0.0
  %1218 = vmatprep.subr.mxu0 0.0
  %1219 = vmatpush1.msra.mxu0 0.0
  %1220 = vmatprep.subr.mxu0 0.0
  %1221 = vmatpush1.msra.mxu0 0.0
  %1222 = vmatprep.subr.mxu0 0.0
  %1223 = vmatpush1.msra.mxu0 %v1190
  %1224 = vmatprep.subr.mxu0 0.0
  %1225 = vmatpush1.msra.mxu0 %v1189
  %1226 = vmatprep.subr.mxu0 0.0
  %1227 = vmatpush1.msra.mxu0 %v1188
  %1228 = vmatprep.subr.mxu0 0.0
  %1229 = vmatpush1.msra.mxu0 %v1187
  %1230 = vmatprep.subr.mxu0 0.0
  %1231 = vmatpush1.msra.mxu0 %v1186
  %1232 = vmatprep.subr.mxu0 0.0
  %1233 = vmatpush1.msra.mxu0 %v1185
  %1234 = vmatprep.subr.mxu0 0.0
  %1235 = vmatpush1.msra.mxu0 %v1184
  %1236 = vmatprep.subr.mxu0 0.0
  %1237 = vmatpush1.msra.mxu0 %v1183
  %1238 = vmatprep.subr.mxu0 0.0
  %1239 = vmatpush1.msra.mxu0 %v1182
  %1240 = vmatprep.subr.mxu0 0.0
  %1241 = vmatpush1.msra.mxu0 %v1181
  %1242 = vmatprep.subr.mxu0 0.0
  %1243 = vmatpush1.msra.mxu0 %v1180
  %1244 = vmatprep.subr.mxu0 0.0
  %1245 = vmatpush1.msra.mxu0 %v1179
  %1246 = vmatprep.subr.mxu0 0.0
  %1247 = vmatpush2.msra.mxu0 0.0
  %1248 = vmatprep.subr.mxu0 0.0
  %1249 = vmatpush2.msra.mxu0 0.0
  %1250 = vmatprep.subr.mxu0 0.0
  %1251 = vmatpush2.msra.mxu0 0.0
  %1252 = vmatprep.subr.mxu0 0.0
  %1253 = vmatpush2.msra.mxu0 0.0
  %1254 = vmatprep.subr.mxu0 0.0
  %1255 = vmatpush2.msra.mxu0 0.0
  %1256 = vmatprep.subr.mxu0 0.0
  %1257 = vmatpush2.msra.mxu0 0.0
  %1258 = vmatprep.subr.mxu0 0.0
  %1259 = vmatpush2.msra.mxu0 0.0
  %1260 = vmatprep.subr.mxu0 0.0
  %1261 = vmatpush2.msra.mxu0 0.0
  %1262 = vmatprep.subr.mxu0 0.0
  %1263 = vmatpush2.msra.mxu0 0.0
  %1264 = vmatprep.subr.mxu0 0.0
  %1265 = vmatpush2.msra.mxu0 0.0
  %1266 = vmatprep.subr.mxu0 0.0
  %1267 = vmatpush2.msra.mxu0 0.0
  %1268 = vmatprep.subr.mxu0 0.0
  %1269 = vmatpush2.msra.mxu0 0.0
  %1270 = vmatprep.subr.mxu0 0.0
  %1271 = vmatpush2.msra.mxu0 0.0
  %1272 = vmatprep.subr.mxu0 0.0
  %1273 = vmatpush2.msra.mxu0 0.0
  %1274 = vmatprep.subr.mxu0 0.0
  %1275 = vmatpush2.msra.mxu0 0.0
  %1276 = vmatprep.subr.mxu0 0.0
  %1277 = vmatpush2.msra.mxu0 0.0
  %1278 = vmatprep.mubr.f32.mxu0 0.0
  %1279 = vmatmul.mubr.f32.gmra.mxu0 %v1197
  %v1280 = vpop.f32.mrf.mxu0
  %v1281 = vadd.f32 %v1195, %v1280
  %v1282 = vpop.f32.mrf.mxu0
  %1283 = vmatprep.mubr.f32.mxu0 0.0
  %1284 = vmatmul.mubr.f32.gmra.mxu0 %v1200
  %v1285 = vpop.f32.mrf.mxu0
  %v1286 = vadd.f32 %v1195, %v1285
  %v1287 = vpop.f32.mrf.mxu0
  %1288 = vmatprep.mubr.f32.mxu0 0.0
  %1289 = vmatmul.mubr.f32.gmra.mxu0 %v1203
  %v1290 = vpop.f32.mrf.mxu0
  %v1291 = vadd.f32 %v1195, %v1290
  %v1292 = vpop.f32.mrf.mxu0
  %1293 = vmatprep.mubr.f32.mxu0 0.0
  %1294 = vmatmul.mubr.f32.gmra.mxu0 %v1206
  %v1295 = vpop.f32.mrf.mxu0
  %v1296 = vadd.f32 %v1195, %v1295
  %v1297 = vpop.f32.mrf.mxu0
  %1298 = vmatprep.mubr.f32.mxu0 0.0
  %1299 = vmatmul.mubr.f32.gmra.mxu0 %v1209
  %v1300 = vpop.f32.mrf.mxu0
  %v1301 = vadd.f32 %v1195, %v1300
  %v1302 = vpop.f32.mrf.mxu0
  %1303 = vmatprep.mubr.f32.mxu0 0.0
  %1304 = vmatmul.mubr.f32.gmra.mxu0 %v1212
  %v1305 = vpop.f32.mrf.mxu0
  %v1306 = vadd.f32 %v1195, %v1305
  %v1307 = vpop.f32.mrf.mxu0
  %1308 = vdwg.mxu0
  %v1309 = vmax.f32 %v1281, 0.0
  %v1310 = vmax.f32 %v1286, 0.0
  %v1311 = vmax.f32 %v1291, 0.0
  %v1312 = vmax.f32 %v1296, 0.0
  %v1313 = vmax.f32 %v1301, 0.0
  %v1314 = vmax.f32 %v1306, 0.0
  %v1315 = vld [vmem:[%s10] sm:$0xff]
  %v1316 = vld [vmem:[%s10 + $0x8] sm:$0xff]
  %v1317 = vld [vmem:[%s10 + $0x10] sm:$0xff]
  %v1318 = vld [vmem:[%s10 + $0x18] sm:$0xff]
  %v1319 = vld [vmem:[%s2 + $0x6] sm:$0x1]
  %v1320 = vlaneseq
  %v1321 = vshrl.u32 %v1320, 7
  %v1322 = vsub.s32 0, %v1321
  %v1323 = vrot.slane %v1319, %v1322
  %v1325 = vsel %vm445, %v1309, 0
  %v1328 = vsel %vm445, %v1310, 0
  %v1331 = vsel %vm445, %v1311, 0
  %v1334 = vsel %vm445, %v1312, 0
  %v1337 = vsel %vm445, %v1313, 0
  %v1340 = vsel %vm445, %v1314, 0
  %1342 = vmatprep.subr.mxu0 0.0
  %1343 = vmatpush1.msra.mxu0 0.0
  %1344 = vmatprep.subr.mxu0 0.0
  %1345 = vmatpush1.msra.mxu0 0.0
  %1346 = vmatprep.subr.mxu0 0.0
  %1347 = vmatpush1.msra.mxu0 0.0
  %1348 = vmatprep.subr.mxu0 0.0
  %1349 = vmatpush1.msra.mxu0 0.0
  %1350 = vmatprep.subr.mxu0 0.0
  %1351 = vmatpush1.msra.mxu0 0.0
  %1352 = vmatprep.subr.mxu0 0.0
  %1353 = vmatpush1.msra.mxu0 0.0
  %1354 = vmatprep.subr.mxu0 0.0
  %1355 = vmatpush1.msra.mxu0 0.0
  %1356 = vmatprep.subr.mxu0 0.0
  %1357 = vmatpush1.msra.mxu0 0.0
  %1358 = vmatprep.subr.mxu0 0.0
  %1359 = vmatpush1.msra.mxu0 0.0
  %1360 = vmatprep.subr.mxu0 0.0
  %1361 = vmatpush1.msra.mxu0 0.0
  %1362 = vmatprep.subr.mxu0 0.0
  %1363 = vmatpush1.msra.mxu0 0.0
  %1364 = vmatprep.subr.mxu0 0.0
  %1365 = vmatpush1.msra.mxu0 0.0
  %1366 = vmatprep.subr.mxu0 0.0
  %1367 = vmatpush1.msra.mxu0 %v1318
  %1368 = vmatprep.subr.mxu0 0.0
  %1369 = vmatpush1.msra.mxu0 %v1317
  %1370 = vmatprep.subr.mxu0 0.0
  %1371 = vmatpush1.msra.mxu0 %v1316
  %1372 = vmatprep.subr.mxu0 0.0
  %1373 = vmatpush1.msra.mxu0 %v1315
  %1374 = vmatprep.subr.mxu0 0.0
  %1375 = vmatpush2.msra.mxu0 0.0
  %1376 = vmatprep.subr.mxu0 0.0
  %1377 = vmatpush2.msra.mxu0 0.0
  %1378 = vmatprep.subr.mxu0 0.0
  %1379 = vmatpush2.msra.mxu0 0.0
  %1380 = vmatprep.subr.mxu0 0.0
  %1381 = vmatpush2.msra.mxu0 0.0
  %1382 = vmatprep.subr.mxu0 0.0
  %1383 = vmatpush2.msra.mxu0 0.0
  %1384 = vmatprep.subr.mxu0 0.0
  %1385 = vmatpush2.msra.mxu0 0.0
  %1386 = vmatprep.subr.mxu0 0.0
  %1387 = vmatpush2.msra.mxu0 0.0
  %1388 = vmatprep.subr.mxu0 0.0
  %1389 = vmatpush2.msra.mxu0 0.0
  %1390 = vmatprep.subr.mxu0 0.0
  %1391 = vmatpush2.msra.mxu0 0.0
  %1392 = vmatprep.subr.mxu0 0.0
  %1393 = vmatpush2.msra.mxu0 0.0
  %1394 = vmatprep.subr.mxu0 0.0
  %1395 = vmatpush2.msra.mxu0 0.0
  %1396 = vmatprep.subr.mxu0 0.0
  %1397 = vmatpush2.msra.mxu0 0.0
  %1398 = vmatprep.subr.mxu0 0.0
  %1399 = vmatpush2.msra.mxu0 0.0
  %1400 = vmatprep.subr.mxu0 0.0
  %1401 = vmatpush2.msra.mxu0 0.0
  %1402 = vmatprep.subr.mxu0 0.0
  %1403 = vmatpush2.msra.mxu0 0.0
  %1404 = vmatprep.subr.mxu0 0.0
  %1405 = vmatpush2.msra.mxu0 0.0
  %1406 = vmatprep.mubr.f32.mxu0 0.0
  %1407 = vmatmul.mubr.f32.gmra.mxu0 %v1325
  %v1408 = vpop.f32.mrf.mxu0
  %v1409 = vadd.f32 %v1323, %v1408
  %v1410 = vpop.f32.mrf.mxu0
  %1411 = vmatprep.mubr.f32.mxu0 0.0
  %1412 = vmatmul.mubr.f32.gmra.mxu0 %v1328
  %v1413 = vpop.f32.mrf.mxu0
  %v1414 = vadd.f32 %v1323, %v1413
  %v1415 = vpop.f32.mrf.mxu0
  %1416 = vmatprep.mubr.f32.mxu0 0.0
  %1417 = vmatmul.mubr.f32.gmra.mxu0 %v1331
  %v1418 = vpop.f32.mrf.mxu0
  %v1419 = vadd.f32 %v1323, %v1418
  %v1420 = vpop.f32.mrf.mxu0
  %1421 = vmatprep.mubr.f32.mxu0 0.0
  %1422 = vmatmul.mubr.f32.gmra.mxu0 %v1334
  %v1423 = vpop.f32.mrf.mxu0
  %v1424 = vadd.f32 %v1323, %v1423
  %v1425 = vpop.f32.mrf.mxu0
  %1426 = vmatprep.mubr.f32.mxu0 0.0
  %1427 = vmatmul.mubr.f32.gmra.mxu0 %v1337
  %v1428 = vpop.f32.mrf.mxu0
  %v1429 = vadd.f32 %v1323, %v1428
  %v1430 = vpop.f32.mrf.mxu0
  %1431 = vmatprep.mubr.f32.mxu0 0.0
  %1432 = vmatmul.mubr.f32.gmra.mxu0 %v1340
  %v1433 = vpop.f32.mrf.mxu0
  %v1434 = vadd.f32 %v1323, %v1433
  %v1435 = vpop.f32.mrf.mxu0
  %1436 = vdwg.mxu0
  %v1437 = vadd.f32 %v1409, %v953
  %v1438 = vadd.f32 %v1414, %v954
  %v1439 = vadd.f32 %v1419, %v955
  %v1440 = vadd.f32 %v1424, %v956
  %v1441 = vadd.f32 %v1429, %v957
  %v1442 = vadd.f32 %v1434, %v958
  %v1443 = vmax.f32 %v1437, 0.0
  %v1444 = vmax.f32 %v1438, 0.0
  %v1445 = vmax.f32 %v1439, 0.0
  %v1446 = vmax.f32 %v1440, 0.0
  %v1447 = vmax.f32 %v1441, 0.0
  %v1448 = vmax.f32 %v1442, 0.0
  %v1449 = vld [vmem:[%s11] sm:$0xff]
  %v1450 = vld [vmem:[%s11 + $0x8] sm:$0xff]
  %v1451 = vld [vmem:[%s11 + $0x10] sm:$0xff]
  %v1452 = vld [vmem:[%s11 + $0x18] sm:$0xff]
  %v1453 = vld [vmem:[%s3] sm:$0x1]
  %v1455 = vlaneseq
  %v1456 = vshrl.u32 %v1455, 7
  %v1457 = vsub.s32 0, %v1456
  %v1458 = vrot.slane %v1453, %v1457
  %v1461 = vsel %vm445, %v1443, 0
  %v1464 = vsel %vm445, %v1444, 0
  %v1467 = vsel %vm445, %v1445, 0
  %v1470 = vsel %vm445, %v1446, 0
  %v1473 = vsel %vm445, %v1447, 0
  %v1476 = vsel %vm445, %v1448, 0
  %1478 = vmatprep.subr.mxu0 0.0
  %1479 = vmatpush1.msra.mxu0 0.0
  %1480 = vmatprep.subr.mxu0 0.0
  %1481 = vmatpush1.msra.mxu0 0.0
  %1482 = vmatprep.subr.mxu0 0.0
  %1483 = vmatpush1.msra.mxu0 0.0
  %1484 = vmatprep.subr.mxu0 0.0
  %1485 = vmatpush1.msra.mxu0 0.0
  %1486 = vmatprep.subr.mxu0 0.0
  %1487 = vmatpush1.msra.mxu0 0.0
  %1488 = vmatprep.subr.mxu0 0.0
  %1489 = vmatpush1.msra.mxu0 0.0
  %1490 = vmatprep.subr.mxu0 0.0
  %1491 = vmatpush1.msra.mxu0 0.0
  %1492 = vmatprep.subr.mxu0 0.0
  %1493 = vmatpush1.msra.mxu0 0.0
  %1494 = vmatprep.subr.mxu0 0.0
  %1495 = vmatpush1.msra.mxu0 0.0
  %1496 = vmatprep.subr.mxu0 0.0
  %1497 = vmatpush1.msra.mxu0 0.0
  %1498 = vmatprep.subr.mxu0 0.0
  %1499 = vmatpush1.msra.mxu0 0.0
  %1500 = vmatprep.subr.mxu0 0.0
  %1501 = vmatpush1.msra.mxu0 0.0
  %1502 = vmatprep.subr.mxu0 0.0
  %1503 = vmatpush1.msra.mxu0 %v1452
  %1504 = vmatprep.subr.mxu0 0.0
  %1505 = vmatpush1.msra.mxu0 %v1451
  %1506 = vmatprep.subr.mxu0 0.0
  %1507 = vmatpush1.msra.mxu0 %v1450
  %1508 = vmatprep.subr.mxu0 0.0
  %1509 = vmatpush1.msra.mxu0 %v1449
  %1510 = vmatprep.subr.mxu0 0.0
  %1511 = vmatpush2.msra.mxu0 0.0
  %1512 = vmatprep.subr.mxu0 0.0
  %1513 = vmatpush2.msra.mxu0 0.0
  %1514 = vmatprep.subr.mxu0 0.0
  %1515 = vmatpush2.msra.mxu0 0.0
  %1516 = vmatprep.subr.mxu0 0.0
  %1517 = vmatpush2.msra.mxu0 0.0
  %1518 = vmatprep.subr.mxu0 0.0
  %1519 = vmatpush2.msra.mxu0 0.0
  %1520 = vmatprep.subr.mxu0 0.0
  %1521 = vmatpush2.msra.mxu0 0.0
  %1522 = vmatprep.subr.mxu0 0.0
  %1523 = vmatpush2.msra.mxu0 0.0
  %1524 = vmatprep.subr.mxu0 0.0
  %1525 = vmatpush2.msra.mxu0 0.0
  %1526 = vmatprep.subr.mxu0 0.0
  %1527 = vmatpush2.msra.mxu0 0.0
  %1528 = vmatprep.subr.mxu0 0.0
  %1529 = vmatpush2.msra.mxu0 0.0
  %1530 = vmatprep.subr.mxu0 0.0
  %1531 = vmatpush2.msra.mxu0 0.0
  %1532 = vmatprep.subr.mxu0 0.0
  %1533 = vmatpush2.msra.mxu0 0.0
  %1534 = vmatprep.subr.mxu0 0.0
  %1535 = vmatpush2.msra.mxu0 0.0
  %1536 = vmatprep.subr.mxu0 0.0
  %1537 = vmatpush2.msra.mxu0 0.0
  %1538 = vmatprep.subr.mxu0 0.0
  %1539 = vmatpush2.msra.mxu0 0.0
  %1540 = vmatprep.subr.mxu0 0.0
  %1541 = vmatpush2.msra.mxu0 0.0
  %1542 = vmatprep.mubr.f32.mxu0 0.0
  %1543 = vmatmul.mubr.f32.gmra.mxu0 %v1461
  %v1544 = vpop.f32.mrf.mxu0
  %v1545 = vadd.f32 %v1458, %v1544
  %v1546 = vpop.f32.mrf.mxu0
  %1547 = vmatprep.mubr.f32.mxu0 0.0
  %1548 = vmatmul.mubr.f32.gmra.mxu0 %v1464
  %v1549 = vpop.f32.mrf.mxu0
  %v1550 = vadd.f32 %v1458, %v1549
  %v1551 = vpop.f32.mrf.mxu0
  %1552 = vmatprep.mubr.f32.mxu0 0.0
  %1553 = vmatmul.mubr.f32.gmra.mxu0 %v1467
  %v1554 = vpop.f32.mrf.mxu0
  %v1555 = vadd.f32 %v1458, %v1554
  %v1556 = vpop.f32.mrf.mxu0
  %1557 = vmatprep.mubr.f32.mxu0 0.0
  %1558 = vmatmul.mubr.f32.gmra.mxu0 %v1470
  %v1559 = vpop.f32.mrf.mxu0
  %v1560 = vadd.f32 %v1458, %v1559
  %v1561 = vpop.f32.mrf.mxu0
  %1562 = vmatprep.mubr.f32.mxu0 0.0
  %1563 = vmatmul.mubr.f32.gmra.mxu0 %v1473
  %v1564 = vpop.f32.mrf.mxu0
  %v1565 = vadd.f32 %v1458, %v1564
  %v1566 = vpop.f32.mrf.mxu0
  %1567 = vmatprep.mubr.f32.mxu0 0.0
  %1568 = vmatmul.mubr.f32.gmra.mxu0 %v1476
  %v1569 = vpop.f32.mrf.mxu0
  %v1570 = vadd.f32 %v1458, %v1569
  %v1571 = vpop.f32.mrf.mxu0
  %1572 = vdwg.mxu0
  %1573 = vst.msk [vmem:[%s12] sm:$0xff] %vm268, %v1545
  %1574 = vst.msk [vmem:[%s12 + $0x8] sm:$0xff] %vm268, %v1550
  %1575 = vst.msk [vmem:[%s12 + $0x10] sm:$0xff] %vm268, %v1555
  %1576 = vst.msk [vmem:[%s12 + $0x18] sm:$0xff] %vm268, %v1560
  %1577 = vst.msk [vmem:[%s12 + $0x20] sm:$0xff] %vm268, %v1565
  %1578 = vst.msk [vmem:[%s12 + $0x28] sm:$0xff] %vm268, %v1570
  // Predicated region
  $region50: #{resnet1d_pallas.1} parent=0 // pred_check
    _
  $region51: #{resnet1d_pallas.1} parent=0 // pred_check_branch
    %1580 = sbr.rel (0) target = $region53
  $region52: #{resnet1d_pallas.1} parent=0 // pred_region
    _
  $region53: #{resnet1d_pallas.1} parent=0 // pred_fallthru
    _
  // Predicated region
  $region54: #{resnet1d_pallas.1} parent=0 // pred_check
    _
  $region55: #{resnet1d_pallas.1} parent=0 // pred_check_branch
    %1582 = sbr.rel (0) target = $region57
  $region56: #{resnet1d_pallas.1} parent=0 // pred_region
    _
  $region57: #{resnet1d_pallas.1} parent=0 // pred_fallthru
    _

</llo_original>
